<compile_context>
chip_gen: v7x
topology: tpu7x:2x2x1
jax: 0.10.0
libtpu: 0.0.40
codegen_flags: <defaults>
</compile_context>

<pallas_src>
import math
from functools import partial

import jax
import jax.numpy as jnp
from jax.experimental import pallas as pl
from jax.experimental.pallas import tpu as pltpu


def _layer_norm(v, gamma, beta, eps=1e-5):
    # gamma/beta come in as (1, C) and broadcast over (rows, C); all f32.
    mu = jnp.mean(v, axis=-1, keepdims=True)
    var = jnp.mean(jnp.square(v - mu), axis=-1, keepdims=True)
    return (v - mu) * jax.lax.rsqrt(var + eps) * gamma + beta


def _block_kernel(n_heads, tq,
                  x_ref, wqkv_ref, wp_ref, bp_ref,
                  g1_ref, be1_ref, g2_ref, be2_ref,
                  w1_ref, b1_ref, w2_ref, b2_ref,
                  o_ref, q_sc, k_sc, v_sc):
    _, T, C = x_ref.shape
    H = n_heads
    D = C // H
    scale = 1.0 / math.sqrt(D)
    qi = pl.program_id(1)

    # ---- Q/K/V for the whole sequence: computed once per batch element (q-tile 0) with a
    #      single fused (T, C) x (C, 3C) matmul, cached head-major (H, T, D) in bf16 scratch.
    @pl.when(qi == 0)
    def _():
        x_full = x_ref[0].astype(jnp.float32)                          # (T, C)
        xn = _layer_norm(x_full, g1_ref[...], be1_ref[...])
        qkv = jnp.dot(xn.astype(jnp.bfloat16), wqkv_ref[...],          # fused Q|K|V matmul
                      preferred_element_type=jnp.float32)              # (T, 3C) f32
        for h in range(H):                                             # static unroll: layout only
            q_sc[h] = (qkv[:, h * D:(h + 1) * D] * scale).astype(jnp.bfloat16)
            k_sc[h] = qkv[:, C + h * D:C + (h + 1) * D].astype(jnp.bfloat16)
            v_sc[h] = qkv[:, 2 * C + h * D:2 * C + (h + 1) * D].astype(jnp.bfloat16)

    # ---- attention branch for this query tile ----
    row0 = pl.multiple_of(qi * tq, tq)
    x_t = x_ref[0, pl.ds(row0, tq), :].astype(jnp.float32)             # (tq, C) for residual
    qh = q_sc[:, pl.ds(row0, tq), :]                                   # (H, tq, D) bf16, pre-scaled
    kh = k_sc[...]                                                     # (H, T, D) bf16
    vh = v_sc[...]

    s = jnp.einsum('hqd,hkd->hqk', qh, kh,
                   preferred_element_type=jnp.float32)                 # (H, tq, T) f32
    m = jnp.max(s, axis=-1, keepdims=True)
    p = jnp.exp(s - m)
    denom = jnp.sum(p, axis=-1, keepdims=True)
    p = p * pl.reciprocal(denom, approx=True)                          # EUP divide
    # TODO(synk): attention dropout1 omitted (eval mode / p = 0.0 -> identity).
    oh = jnp.einsum('hqk,hkd->hqd', p.astype(jnp.bfloat16), vh,
                    preferred_element_type=jnp.float32)                # (H, tq, D) f32
    attn = jnp.concatenate([oh[h] for h in range(H)], axis=-1)         # (tq, C), layout only
    attn = jnp.dot(attn.astype(jnp.bfloat16), wp_ref[...],
                   preferred_element_type=jnp.float32) + bp_ref[...]
    # TODO(synk): projection dropout2 omitted (eval mode).
    x1 = x_t + attn                                                    # first residual (f32)

    # ---- FFN branch: ffn(LN2(x1)) ----
    xn2 = _layer_norm(x1, g2_ref[...], be2_ref[...])
    hid = jnp.dot(xn2.astype(jnp.bfloat16), w1_ref[...],
                  preferred_element_type=jnp.float32) + b1_ref[...]
    # tanh-form GELU routes through the EUP; use approximate=False for exact erf parity.
    hid = jax.nn.gelu(hid, approximate=True)
    ffn = jnp.dot(hid.astype(jnp.bfloat16), w2_ref[...],
                  preferred_element_type=jnp.float32) + b2_ref[...]
    # TODO(synk): FFN dropout omitted (eval mode).
    o_ref[0] = (x1 + ffn).astype(o_ref.dtype)                          # second residual


def transformer_block(x, params, n_heads, tq=None):
    B, T, C = x.shape
    assert C % n_heads == 0
    H, D = n_heads, C // n_heads
    if tq is None:
        tq = T if T <= 256 else 256                   # query rows per grid step
    assert T % tq == 0
    nq = T // tq

    # Fused Q|K|V weight (C, 3C); all matmul weights shipped as bf16.
    wqkv = jnp.concatenate([params["wq"], params["wk"], params["wv"]], axis=1)
    flat = [
        wqkv.astype(jnp.bfloat16),
        params["wp"].astype(jnp.bfloat16),
        params["bp"],
        params["g1"], params["be1"], params["g2"], params["be2"],
        params["w1"].astype(jnp.bfloat16),
        params["b1"],
        params["w2"].astype(jnp.bfloat16),
        params["b2"],
    ]

    def full_spec(a):
        nd = a.ndim
        return pl.BlockSpec(a.shape, lambda b, i, nd=nd: (0,) * nd)

    in_specs = ([pl.BlockSpec((1, T, C), lambda b, i: (b, 0, 0))]      # full seq, resident per b
                + [full_spec(a) for a in flat])

    return pl.pallas_call(
        partial(_block_kernel, n_heads, tq),
        out_shape=jax.ShapeDtypeStruct((B, T, C), x.dtype),
        grid=(B, nq),
        in_specs=in_specs,
        out_specs=pl.BlockSpec((1, tq, C), lambda b, i: (b, i, 0)),
        scratch_shapes=[
            pltpu.VMEM((H, T, D), jnp.bfloat16),     # cached Q (head-major, pre-scaled)
            pltpu.VMEM((H, T, D), jnp.bfloat16),     # cached K (head-major)
            pltpu.VMEM((H, T, D), jnp.bfloat16),     # cached V (head-major)
        ],
        compiler_params=pltpu.CompilerParams(
            dimension_semantics=("parallel", "arbitrary"),   # q-tile axis carries QKV scratch
            vmem_limit_bytes=64 * 1024 * 1024,
        ),
    )(x, *flat)


def init_params(key, n_embd):
    C = n_embd
    ks = jax.random.split(key, 8)

    def w(k, shape):
        return jax.random.normal(k, shape, jnp.float32) * 0.02

    return {
        # attention projections, already (in, out)
        "wq": w(ks[0], (C, C)),
        "wk": w(ks[1], (C, C)),
        "wv": w(ks[2], (C, C)),
        "wp": w(ks[3], (C, C)),
        "bp": jax.random.normal(ks[4], (1, C), jnp.float32) * 0.02,
        # layer norms
        "g1": jnp.ones((1, C), jnp.float32),
        "be1": jnp.zeros((1, C), jnp.float32),
        "g2": jnp.ones((1, C), jnp.float32),
        "be2": jnp.zeros((1, C), jnp.float32),
        # FFN
        "w1": w(ks[5], (C, 4 * C)),
        "b1": jax.random.normal(ks[6], (1, 4 * C), jnp.float32) * 0.02,
        "w2": w(ks[7], (4 * C, C)),
        "b2": jnp.zeros((1, C), jnp.float32),
    }


def reference(x, p, n_heads):
    """Pure-JAX f32 mirror of the PyTorch Block.forward (dropout = identity, exact-erf GELU)."""
    B, T, C = x.shape
    D = C // n_heads

    def ln(v, g, b):
        mu = v.mean(-1, keepdims=True)
        var = ((v - mu) ** 2).mean(-1, keepdims=True)
        return (v - mu) / jnp.sqrt(var + 1e-5) * g + b

    xn = ln(x, p["g1"], p["be1"])
    q, k, v = xn @ p["wq"], xn @ p["wk"], xn @ p["wv"]
    qh = q.reshape(B, T, n_heads, D).transpose(0, 2, 1, 3)
    kh = k.reshape(B, T, n_heads, D).transpose(0, 2, 1, 3)
    vh = v.reshape(B, T, n_heads, D).transpose(0, 2, 1, 3)
    aff = jax.nn.softmax((qh @ kh.transpose(0, 1, 3, 2)) / math.sqrt(D), axis=-1)
    out = (aff @ vh).transpose(0, 2, 1, 3).reshape(B, T, C)
    x1 = x + out @ p["wp"] + p["bp"]
    xn2 = ln(x1, p["g2"], p["be2"])
    h = jax.nn.gelu(xn2 @ p["w1"] + p["b1"], approximate=False)
    return x1 + h @ p["w2"] + p["b2"]


if __name__ == "__main__":
    B, T, C, H = 2, 8, 32, 4   # batch, seq, n_embd, n_heads
    key = jax.random.PRNGKey(0)
    kx, kp = jax.random.split(key)
    x = jax.random.normal(kx, (B, T, C), jnp.float32)
    params = init_params(kp, C)

    out = transformer_block(x, params, H)
    jax.block_until_ready(out)

    ref = reference(x, params, H)
    assert out.shape == (B, T, C)
    err = float(jnp.max(jnp.abs(out - ref)))
    # bf16 matmul operands + tanh GELU + approx reciprocal => loosened tolerance vs f32 reference.
    assert jnp.allclose(out, ref, atol=2e-2, rtol=2e-2), err
    print("KERNEL_OK")
</pallas_src>

<mosaic_0001>
module attributes {stable_mosaic.version = 11 : i64} {
  func.func @_block_kernel(%arg0: i32, %arg1: i32, %arg2: memref<1x8x32xf32, #tpu.memory_space<vmem>>, %arg3: memref<32x96xbf16, #tpu.memory_space<vmem>>, %arg4: memref<32x32xbf16, #tpu.memory_space<vmem>>, %arg5: memref<1x32xf32, #tpu.memory_space<vmem>>, %arg6: memref<1x32xf32, #tpu.memory_space<vmem>>, %arg7: memref<1x32xf32, #tpu.memory_space<vmem>>, %arg8: memref<1x32xf32, #tpu.memory_space<vmem>>, %arg9: memref<1x32xf32, #tpu.memory_space<vmem>>, %arg10: memref<32x128xbf16, #tpu.memory_space<vmem>>, %arg11: memref<1x128xf32, #tpu.memory_space<vmem>>, %arg12: memref<128x32xbf16, #tpu.memory_space<vmem>>, %arg13: memref<1x32xf32, #tpu.memory_space<vmem>>, %arg14: memref<1x8x32xf32, #tpu.memory_space<vmem>>, %arg15: memref<4x8x8xbf16, #tpu.memory_space<vmem>>, %arg16: memref<4x8x8xbf16, #tpu.memory_space<vmem>>, %arg17: memref<4x8x8xbf16, #tpu.memory_space<vmem>>) attributes {dimension_semantics = [#tpu.dimension_semantics<parallel>, #tpu.dimension_semantics<arbitrary>], iteration_bounds = array<i64: 2, 1>, scalar_prefetch = 0 : i64, scratch_operands = 3 : i64, tpu.core_type = #tpu.core_type<tc>, window_params = [{transform_indices = @transform_0, window_bounds = array<i64: 1, 8, 32>}, {pipeline_mode = #tpu.pipeline_mode<synchronous>, transform_indices = @transform_1, window_bounds = array<i64: 32, 96>}, {pipeline_mode = #tpu.pipeline_mode<synchronous>, transform_indices = @transform_2, window_bounds = array<i64: 32, 32>}, {pipeline_mode = #tpu.pipeline_mode<synchronous>, transform_indices = @transform_3, window_bounds = array<i64: 1, 32>}, {pipeline_mode = #tpu.pipeline_mode<synchronous>, transform_indices = @transform_4, window_bounds = array<i64: 1, 32>}, {pipeline_mode = #tpu.pipeline_mode<synchronous>, transform_indices = @transform_5, window_bounds = array<i64: 1, 32>}, {pipeline_mode = #tpu.pipeline_mode<synchronous>, transform_indices = @transform_6, window_bounds = array<i64: 1, 32>}, {pipeline_mode = #tpu.pipeline_mode<synchronous>, transform_indices = @transform_7, window_bounds = array<i64: 1, 32>}, {pipeline_mode = #tpu.pipeline_mode<synchronous>, transform_indices = @transform_8, window_bounds = array<i64: 32, 128>}, {pipeline_mode = #tpu.pipeline_mode<synchronous>, transform_indices = @transform_9, window_bounds = array<i64: 1, 128>}, {pipeline_mode = #tpu.pipeline_mode<synchronous>, transform_indices = @transform_10, window_bounds = array<i64: 128, 32>}, {pipeline_mode = #tpu.pipeline_mode<synchronous>, transform_indices = @transform_11, window_bounds = array<i64: 1, 32>}, {transform_indices = @transform_12, window_bounds = array<i64: 1, 8, 32>}]} {
    %c0_i32 = arith.constant 0 : i32
    %0 = arith.cmpi eq, %arg1, %c0_i32 : i32
    %1 = arith.extui %0 : i1 to i32
    %c0_i32_0 = arith.constant 0 : i32
    %2 = arith.cmpi ne, %1, %c0_i32_0 : i32
    scf.if %2 {
      %c0_44 = arith.constant 0 : index
      %c0_45 = arith.constant 0 : index
      %c0_46 = arith.constant 0 : index
      %94 = vector.load %arg2[%c0_44, %c0_45, %c0_46] : memref<1x8x32xf32, #tpu.memory_space<vmem>>, vector<1x8x32xf32>
      %95 = vector.shape_cast %94 : vector<1x8x32xf32> to vector<8x32xf32>
      %c0_47 = arith.constant 0 : index
      %c0_48 = arith.constant 0 : index
      %96 = vector.load %arg6[%c0_47, %c0_48] : memref<1x32xf32, #tpu.memory_space<vmem>>, vector<1x32xf32>
      %c0_49 = arith.constant 0 : index
      %c0_50 = arith.constant 0 : index
      %97 = vector.load %arg7[%c0_49, %c0_50] : memref<1x32xf32, #tpu.memory_space<vmem>>, vector<1x32xf32>
      %cst_51 = arith.constant dense<0.000000e+00> : vector<8xf32>
      %98 = vector.multi_reduction <add>, %95, %cst_51 [1] : vector<8x32xf32> to vector<8xf32>
      %99 = vector.shape_cast %98 : vector<8xf32> to vector<8x1xf32>
      %cst_52 = arith.constant 3.200000e+01 : f32
      %100 = vector.broadcast %cst_52 : f32 to vector<8x1xf32>
      %101 = arith.divf %99, %100 : vector<8x1xf32>
      %102 = vector.broadcast %101 : vector<8x1xf32> to vector<8x32xf32>
      %103 = arith.subf %95, %102 : vector<8x32xf32>
      %104 = arith.mulf %103, %103 : vector<8x32xf32>
      %cst_53 = arith.constant dense<0.000000e+00> : vector<8xf32>
      %105 = vector.multi_reduction <add>, %104, %cst_53 [1] : vector<8x32xf32> to vector<8xf32>
      %106 = vector.shape_cast %105 : vector<8xf32> to vector<8x1xf32>
      %cst_54 = arith.constant 3.200000e+01 : f32
      %107 = vector.broadcast %cst_54 : f32 to vector<8x1xf32>
      %108 = arith.divf %106, %107 : vector<8x1xf32>
      %109 = vector.broadcast %101 : vector<8x1xf32> to vector<8x32xf32>
      %110 = arith.subf %95, %109 : vector<8x32xf32>
      %cst_55 = arith.constant 9.99999974E-6 : f32
      %111 = vector.broadcast %cst_55 : f32 to vector<8x1xf32>
      %112 = arith.addf %108, %111 : vector<8x1xf32>
      %113 = math.rsqrt %112 : vector<8x1xf32>
      %114 = vector.broadcast %113 : vector<8x1xf32> to vector<8x32xf32>
      %115 = arith.mulf %110, %114 : vector<8x32xf32>
      %116 = vector.broadcast %96 : vector<1x32xf32> to vector<8x32xf32>
      %117 = arith.mulf %115, %116 : vector<8x32xf32>
      %118 = vector.broadcast %97 : vector<1x32xf32> to vector<8x32xf32>
      %119 = arith.addf %117, %118 : vector<8x32xf32>
      %120 = arith.truncf %119 : vector<8x32xf32> to vector<8x32xbf16>
      %c0_56 = arith.constant 0 : index
      %c0_57 = arith.constant 0 : index
      %121 = vector.load %arg3[%c0_56, %c0_57] : memref<32x96xbf16, #tpu.memory_space<vmem>>, vector<32x96xbf16>
      %cst_58 = arith.constant dense<0.000000e+00> : vector<8x96xf32>
      %122 = tpu.matmul %120, %121, %cst_58 {dimension_numbers = #tpu.dot_dimension_numbers<[1], [0], [0], [1], [0, 0, 1, 1], [], []>} : vector<8x32xbf16>, vector<32x96xbf16>, vector<8x96xf32> -> vector<8x96xf32>
      %123 = vector.extract_strided_slice %122 {offsets = [0, 0], sizes = [8, 8], strides = [1, 1]} : vector<8x96xf32> to vector<8x8xf32>
      %cst_59 = arith.constant 0.353553385 : f32
      %124 = vector.broadcast %cst_59 : f32 to vector<8x8xf32>
      %125 = arith.mulf %123, %124 : vector<8x8xf32>
      %126 = arith.truncf %125 : vector<8x8xf32> to vector<8x8xbf16>
      %c0_60 = arith.constant 0 : index
      %c0_61 = arith.constant 0 : index
      %c0_62 = arith.constant 0 : index
      %127 = vector.load %arg15[%c0_60, %c0_61, %c0_62] : memref<4x8x8xbf16, #tpu.memory_space<vmem>>, vector<1x8x8xbf16>
      %128 = vector.shape_cast %127 : vector<1x8x8xbf16> to vector<8x8xbf16>
      %129 = vector.shape_cast %126 : vector<8x8xbf16> to vector<1x8x8xbf16>
      tpu.vector_store %arg15[%c0_60, %c0_61, %c0_62], %129 {strides = array<i32>} : memref<4x8x8xbf16, #tpu.memory_space<vmem>>, vector<1x8x8xbf16>,
      %130 = vector.extract_strided_slice %122 {offsets = [0, 32], sizes = [8, 8], strides = [1, 1]} : vector<8x96xf32> to vector<8x8xf32>
      %131 = arith.truncf %130 : vector<8x8xf32> to vector<8x8xbf16>
      %c0_63 = arith.constant 0 : index
      %c0_64 = arith.constant 0 : index
      %c0_65 = arith.constant 0 : index
      %132 = vector.load %arg16[%c0_63, %c0_64, %c0_65] : memref<4x8x8xbf16, #tpu.memory_space<vmem>>, vector<1x8x8xbf16>
      %133 = vector.shape_cast %132 : vector<1x8x8xbf16> to vector<8x8xbf16>
      %134 = vector.shape_cast %131 : vector<8x8xbf16> to vector<1x8x8xbf16>
      tpu.vector_store %arg16[%c0_63, %c0_64, %c0_65], %134 {strides = array<i32>} : memref<4x8x8xbf16, #tpu.memory_space<vmem>>, vector<1x8x8xbf16>,
      %135 = vector.extract_strided_slice %122 {offsets = [0, 64], sizes = [8, 8], strides = [1, 1]} : vector<8x96xf32> to vector<8x8xf32>
      %136 = arith.truncf %135 : vector<8x8xf32> to vector<8x8xbf16>
      %c0_66 = arith.constant 0 : index
      %c0_67 = arith.constant 0 : index
      %c0_68 = arith.constant 0 : index
      %137 = vector.load %arg17[%c0_66, %c0_67, %c0_68] : memref<4x8x8xbf16, #tpu.memory_space<vmem>>, vector<1x8x8xbf16>
      %138 = vector.shape_cast %137 : vector<1x8x8xbf16> to vector<8x8xbf16>
      %139 = vector.shape_cast %136 : vector<8x8xbf16> to vector<1x8x8xbf16>
      tpu.vector_store %arg17[%c0_66, %c0_67, %c0_68], %139 {strides = array<i32>} : memref<4x8x8xbf16, #tpu.memory_space<vmem>>, vector<1x8x8xbf16>,
      %140 = vector.extract_strided_slice %122 {offsets = [0, 8], sizes = [8, 8], strides = [1, 1]} : vector<8x96xf32> to vector<8x8xf32>
      %cst_69 = arith.constant 0.353553385 : f32
      %141 = vector.broadcast %cst_69 : f32 to vector<8x8xf32>
      %142 = arith.mulf %140, %141 : vector<8x8xf32>
      %143 = arith.truncf %142 : vector<8x8xf32> to vector<8x8xbf16>
      %c1 = arith.constant 1 : index
      %c0_70 = arith.constant 0 : index
      %c0_71 = arith.constant 0 : index
      %144 = vector.load %arg15[%c1, %c0_70, %c0_71] : memref<4x8x8xbf16, #tpu.memory_space<vmem>>, vector<1x8x8xbf16>
      %145 = vector.shape_cast %144 : vector<1x8x8xbf16> to vector<8x8xbf16>
      %146 = vector.shape_cast %143 : vector<8x8xbf16> to vector<1x8x8xbf16>
      tpu.vector_store %arg15[%c1, %c0_70, %c0_71], %146 {strides = array<i32>} : memref<4x8x8xbf16, #tpu.memory_space<vmem>>, vector<1x8x8xbf16>,
      %147 = vector.extract_strided_slice %122 {offsets = [0, 40], sizes = [8, 8], strides = [1, 1]} : vector<8x96xf32> to vector<8x8xf32>
      %148 = arith.truncf %147 : vector<8x8xf32> to vector<8x8xbf16>
      %c1_72 = arith.constant 1 : index
      %c0_73 = arith.constant 0 : index
      %c0_74 = arith.constant 0 : index
      %149 = vector.load %arg16[%c1_72, %c0_73, %c0_74] : memref<4x8x8xbf16, #tpu.memory_space<vmem>>, vector<1x8x8xbf16>
      %150 = vector.shape_cast %149 : vector<1x8x8xbf16> to vector<8x8xbf16>
      %151 = vector.shape_cast %148 : vector<8x8xbf16> to vector<1x8x8xbf16>
      tpu.vector_store %arg16[%c1_72, %c0_73, %c0_74], %151 {strides = array<i32>} : memref<4x8x8xbf16, #tpu.memory_space<vmem>>, vector<1x8x8xbf16>,
      %152 = vector.extract_strided_slice %122 {offsets = [0, 72], sizes = [8, 8], strides = [1, 1]} : vector<8x96xf32> to vector<8x8xf32>
      %153 = arith.truncf %152 : vector<8x8xf32> to vector<8x8xbf16>
      %c1_75 = arith.constant 1 : index
      %c0_76 = arith.constant 0 : index
      %c0_77 = arith.constant 0 : index
      %154 = vector.load %arg17[%c1_75, %c0_76, %c0_77] : memref<4x8x8xbf16, #tpu.memory_space<vmem>>, vector<1x8x8xbf16>
      %155 = vector.shape_cast %154 : vector<1x8x8xbf16> to vector<8x8xbf16>
      %156 = vector.shape_cast %153 : vector<8x8xbf16> to vector<1x8x8xbf16>
      tpu.vector_store %arg17[%c1_75, %c0_76, %c0_77], %156 {strides = array<i32>} : memref<4x8x8xbf16, #tpu.memory_space<vmem>>, vector<1x8x8xbf16>,
      %157 = vector.extract_strided_slice %122 {offsets = [0, 16], sizes = [8, 8], strides = [1, 1]} : vector<8x96xf32> to vector<8x8xf32>
      %cst_78 = arith.constant 0.353553385 : f32
      %158 = vector.broadcast %cst_78 : f32 to vector<8x8xf32>
      %159 = arith.mulf %157, %158 : vector<8x8xf32>
      %160 = arith.truncf %159 : vector<8x8xf32> to vector<8x8xbf16>
      %c2 = arith.constant 2 : index
      %c0_79 = arith.constant 0 : index
      %c0_80 = arith.constant 0 : index
      %161 = vector.load %arg15[%c2, %c0_79, %c0_80] : memref<4x8x8xbf16, #tpu.memory_space<vmem>>, vector<1x8x8xbf16>
      %162 = vector.shape_cast %161 : vector<1x8x8xbf16> to vector<8x8xbf16>
      %163 = vector.shape_cast %160 : vector<8x8xbf16> to vector<1x8x8xbf16>
      tpu.vector_store %arg15[%c2, %c0_79, %c0_80], %163 {strides = array<i32>} : memref<4x8x8xbf16, #tpu.memory_space<vmem>>, vector<1x8x8xbf16>,
      %164 = vector.extract_strided_slice %122 {offsets = [0, 48], sizes = [8, 8], strides = [1, 1]} : vector<8x96xf32> to vector<8x8xf32>
      %165 = arith.truncf %164 : vector<8x8xf32> to vector<8x8xbf16>
      %c2_81 = arith.constant 2 : index
      %c0_82 = arith.constant 0 : index
      %c0_83 = arith.constant 0 : index
      %166 = vector.load %arg16[%c2_81, %c0_82, %c0_83] : memref<4x8x8xbf16, #tpu.memory_space<vmem>>, vector<1x8x8xbf16>
      %167 = vector.shape_cast %166 : vector<1x8x8xbf16> to vector<8x8xbf16>
      %168 = vector.shape_cast %165 : vector<8x8xbf16> to vector<1x8x8xbf16>
      tpu.vector_store %arg16[%c2_81, %c0_82, %c0_83], %168 {strides = array<i32>} : memref<4x8x8xbf16, #tpu.memory_space<vmem>>, vector<1x8x8xbf16>,
      %169 = vector.extract_strided_slice %122 {offsets = [0, 80], sizes = [8, 8], strides = [1, 1]} : vector<8x96xf32> to vector<8x8xf32>
      %170 = arith.truncf %169 : vector<8x8xf32> to vector<8x8xbf16>
      %c2_84 = arith.constant 2 : index
      %c0_85 = arith.constant 0 : index
      %c0_86 = arith.constant 0 : index
      %171 = vector.load %arg17[%c2_84, %c0_85, %c0_86] : memref<4x8x8xbf16, #tpu.memory_space<vmem>>, vector<1x8x8xbf16>
      %172 = vector.shape_cast %171 : vector<1x8x8xbf16> to vector<8x8xbf16>
      %173 = vector.shape_cast %170 : vector<8x8xbf16> to vector<1x8x8xbf16>
      tpu.vector_store %arg17[%c2_84, %c0_85, %c0_86], %173 {strides = array<i32>} : memref<4x8x8xbf16, #tpu.memory_space<vmem>>, vector<1x8x8xbf16>,
      %174 = vector.extract_strided_slice %122 {offsets = [0, 24], sizes = [8, 8], strides = [1, 1]} : vector<8x96xf32> to vector<8x8xf32>
      %cst_87 = arith.constant 0.353553385 : f32
      %175 = vector.broadcast %cst_87 : f32 to vector<8x8xf32>
      %176 = arith.mulf %174, %175 : vector<8x8xf32>
      %177 = arith.truncf %176 : vector<8x8xf32> to vector<8x8xbf16>
      %c3 = arith.constant 3 : index
      %c0_88 = arith.constant 0 : index
      %c0_89 = arith.constant 0 : index
      %178 = vector.load %arg15[%c3, %c0_88, %c0_89] : memref<4x8x8xbf16, #tpu.memory_space<vmem>>, vector<1x8x8xbf16>
      %179 = vector.shape_cast %178 : vector<1x8x8xbf16> to vector<8x8xbf16>
      %180 = vector.shape_cast %177 : vector<8x8xbf16> to vector<1x8x8xbf16>
      tpu.vector_store %arg15[%c3, %c0_88, %c0_89], %180 {strides = array<i32>} : memref<4x8x8xbf16, #tpu.memory_space<vmem>>, vector<1x8x8xbf16>,
      %181 = vector.extract_strided_slice %122 {offsets = [0, 56], sizes = [8, 8], strides = [1, 1]} : vector<8x96xf32> to vector<8x8xf32>
      %182 = arith.truncf %181 : vector<8x8xf32> to vector<8x8xbf16>
      %c3_90 = arith.constant 3 : index
      %c0_91 = arith.constant 0 : index
      %c0_92 = arith.constant 0 : index
      %183 = vector.load %arg16[%c3_90, %c0_91, %c0_92] : memref<4x8x8xbf16, #tpu.memory_space<vmem>>, vector<1x8x8xbf16>
      %184 = vector.shape_cast %183 : vector<1x8x8xbf16> to vector<8x8xbf16>
      %185 = vector.shape_cast %182 : vector<8x8xbf16> to vector<1x8x8xbf16>
      tpu.vector_store %arg16[%c3_90, %c0_91, %c0_92], %185 {strides = array<i32>} : memref<4x8x8xbf16, #tpu.memory_space<vmem>>, vector<1x8x8xbf16>,
      %186 = vector.extract_strided_slice %122 {offsets = [0, 88], sizes = [8, 8], strides = [1, 1]} : vector<8x96xf32> to vector<8x8xf32>
      %187 = arith.truncf %186 : vector<8x8xf32> to vector<8x8xbf16>
      %c3_93 = arith.constant 3 : index
      %c0_94 = arith.constant 0 : index
      %c0_95 = arith.constant 0 : index
      %188 = vector.load %arg17[%c3_93, %c0_94, %c0_95] : memref<4x8x8xbf16, #tpu.memory_space<vmem>>, vector<1x8x8xbf16>
      %189 = vector.shape_cast %188 : vector<1x8x8xbf16> to vector<8x8xbf16>
      %190 = vector.shape_cast %187 : vector<8x8xbf16> to vector<1x8x8xbf16>
      tpu.vector_store %arg17[%c3_93, %c0_94, %c0_95], %190 {strides = array<i32>} : memref<4x8x8xbf16, #tpu.memory_space<vmem>>, vector<1x8x8xbf16>,
    } else {
    }
    %c8_i32 = arith.constant 8 : i32
    %3 = arith.muli %arg1, %c8_i32 : i32
    %4 = tpu.assume_multiple %3, 8 : i32
    %c0 = arith.constant 0 : index
    %5 = arith.index_cast %4 : i32 to index
    %c0_1 = arith.constant 0 : index
    %6 = vector.load %arg2[%c0, %5, %c0_1] : memref<1x8x32xf32, #tpu.memory_space<vmem>>, vector<1x8x32xf32>
    %7 = vector.shape_cast %6 : vector<1x8x32xf32> to vector<8x32xf32>
    %c0_2 = arith.constant 0 : index
    %8 = arith.index_cast %4 : i32 to index
    %c0_3 = arith.constant 0 : index
    %9 = vector.load %arg15[%c0_2, %8, %c0_3] : memref<4x8x8xbf16, #tpu.memory_space<vmem>>, vector<4x8x8xbf16>
    %c0_4 = arith.constant 0 : index
    %c0_5 = arith.constant 0 : index
    %c0_6 = arith.constant 0 : index
    %10 = vector.load %arg16[%c0_4, %c0_5, %c0_6] : memref<4x8x8xbf16, #tpu.memory_space<vmem>>, vector<4x8x8xbf16>
    %c0_7 = arith.constant 0 : index
    %c0_8 = arith.constant 0 : index
    %c0_9 = arith.constant 0 : index
    %11 = vector.load %arg17[%c0_7, %c0_8, %c0_9] : memref<4x8x8xbf16, #tpu.memory_space<vmem>>, vector<4x8x8xbf16>
    "tpu.trace_start"() <{level = 10 : i32, message = "hqd,hkd->hqk"}> : () -> ()
    %cst = arith.constant dense<0.000000e+00> : vector<4x8x8xf32>
    %12 = tpu.matmul %9, %10, %cst {dimension_numbers = #tpu.dot_dimension_numbers<[2], [2], [1], [1], [0, 0, 0, 1, 1, 1], [0], [0]>} : vector<4x8x8xbf16>, vector<4x8x8xbf16>, vector<4x8x8xf32> -> vector<4x8x8xf32>
    "tpu.trace_stop"() : () -> ()
    %cst_10 = arith.constant dense<0xFF800000> : vector<4x8xf32>
    %13 = vector.multi_reduction <maximumf>, %12, %cst_10 [2] : vector<4x8x8xf32> to vector<4x8xf32>
    %14 = vector.shape_cast %13 : vector<4x8xf32> to vector<4x8x1xf32>
    %15 = vector.broadcast %14 : vector<4x8x1xf32> to vector<4x8x8xf32>
    %16 = arith.subf %12, %15 : vector<4x8x8xf32>
    %17 = math.exp %16 : vector<4x8x8xf32>
    %cst_11 = arith.constant dense<0.000000e+00> : vector<4x8xf32>
    %18 = vector.multi_reduction <add>, %17, %cst_11 [2] : vector<4x8x8xf32> to vector<4x8xf32>
    %19 = vector.shape_cast %18 : vector<4x8xf32> to vector<4x8x1xf32>
    %20 = tpu.reciprocal %19 {approx = true} : vector<4x8x1xf32> -> vector<4x8x1xf32>
    %21 = vector.broadcast %20 : vector<4x8x1xf32> to vector<4x8x8xf32>
    %22 = arith.mulf %17, %21 : vector<4x8x8xf32>
    %23 = arith.truncf %22 : vector<4x8x8xf32> to vector<4x8x8xbf16>
    "tpu.trace_start"() <{level = 10 : i32, message = "hqk,hkd->hqd"}> : () -> ()
    %cst_12 = arith.constant dense<0.000000e+00> : vector<4x8x8xf32>
    %24 = tpu.matmul %23, %11, %cst_12 {dimension_numbers = #tpu.dot_dimension_numbers<[2], [1], [1], [2], [0, 0, 0, 1, 1, 2], [0], [0]>} : vector<4x8x8xbf16>, vector<4x8x8xbf16>, vector<4x8x8xf32> -> vector<4x8x8xf32>
    "tpu.trace_stop"() : () -> ()
    %25 = vector.extract_strided_slice %24 {offsets = [0, 0, 0], sizes = [1, 8, 8], strides = [1, 1, 1]} : vector<4x8x8xf32> to vector<1x8x8xf32>
    %26 = vector.shape_cast %25 : vector<1x8x8xf32> to vector<8x8xf32>
    %27 = vector.extract_strided_slice %24 {offsets = [1, 0, 0], sizes = [1, 8, 8], strides = [1, 1, 1]} : vector<4x8x8xf32> to vector<1x8x8xf32>
    %28 = vector.shape_cast %27 : vector<1x8x8xf32> to vector<8x8xf32>
    %29 = vector.extract_strided_slice %24 {offsets = [2, 0, 0], sizes = [1, 8, 8], strides = [1, 1, 1]} : vector<4x8x8xf32> to vector<1x8x8xf32>
    %30 = vector.shape_cast %29 : vector<1x8x8xf32> to vector<8x8xf32>
    %31 = vector.extract_strided_slice %24 {offsets = [3, 0, 0], sizes = [1, 8, 8], strides = [1, 1, 1]} : vector<4x8x8xf32> to vector<1x8x8xf32>
    %32 = vector.shape_cast %31 : vector<1x8x8xf32> to vector<8x8xf32>
    %33 = tpu.concatenate %26, %28, %30, %32 in 1 : vector<8x8xf32>, vector<8x8xf32>, vector<8x8xf32>, vector<8x8xf32> -> vector<8x32xf32>
    %34 = arith.truncf %33 : vector<8x32xf32> to vector<8x32xbf16>
    %c0_13 = arith.constant 0 : index
    %c0_14 = arith.constant 0 : index
    %35 = vector.load %arg4[%c0_13, %c0_14] : memref<32x32xbf16, #tpu.memory_space<vmem>>, vector<32x32xbf16>
    %cst_15 = arith.constant dense<0.000000e+00> : vector<8x32xf32>
    %36 = tpu.matmul %34, %35, %cst_15 {dimension_numbers = #tpu.dot_dimension_numbers<[1], [0], [0], [1], [0, 0, 1, 1], [], []>} : vector<8x32xbf16>, vector<32x32xbf16>, vector<8x32xf32> -> vector<8x32xf32>
    %c0_16 = arith.constant 0 : index
    %c0_17 = arith.constant 0 : index
    %37 = vector.load %arg5[%c0_16, %c0_17] : memref<1x32xf32, #tpu.memory_space<vmem>>, vector<1x32xf32>
    %38 = vector.broadcast %37 : vector<1x32xf32> to vector<8x32xf32>
    %39 = arith.addf %36, %38 : vector<8x32xf32>
    %40 = arith.addf %7, %39 : vector<8x32xf32>
    %c0_18 = arith.constant 0 : index
    %c0_19 = arith.constant 0 : index
    %41 = vector.load %arg8[%c0_18, %c0_19] : memref<1x32xf32, #tpu.memory_space<vmem>>, vector<1x32xf32>
    %c0_20 = arith.constant 0 : index
    %c0_21 = arith.constant 0 : index
    %42 = vector.load %arg9[%c0_20, %c0_21] : memref<1x32xf32, #tpu.memory_space<vmem>>, vector<1x32xf32>
    %cst_22 = arith.constant dense<0.000000e+00> : vector<8xf32>
    %43 = vector.multi_reduction <add>, %40, %cst_22 [1] : vector<8x32xf32> to vector<8xf32>
    %44 = vector.shape_cast %43 : vector<8xf32> to vector<8x1xf32>
    %cst_23 = arith.constant 3.200000e+01 : f32
    %45 = vector.broadcast %cst_23 : f32 to vector<8x1xf32>
    %46 = arith.divf %44, %45 : vector<8x1xf32>
    %47 = vector.broadcast %46 : vector<8x1xf32> to vector<8x32xf32>
    %48 = arith.subf %40, %47 : vector<8x32xf32>
    %49 = arith.mulf %48, %48 : vector<8x32xf32>
    %cst_24 = arith.constant dense<0.000000e+00> : vector<8xf32>
    %50 = vector.multi_reduction <add>, %49, %cst_24 [1] : vector<8x32xf32> to vector<8xf32>
    %51 = vector.shape_cast %50 : vector<8xf32> to vector<8x1xf32>
    %cst_25 = arith.constant 3.200000e+01 : f32
    %52 = vector.broadcast %cst_25 : f32 to vector<8x1xf32>
    %53 = arith.divf %51, %52 : vector<8x1xf32>
    %54 = vector.broadcast %46 : vector<8x1xf32> to vector<8x32xf32>
    %55 = arith.subf %40, %54 : vector<8x32xf32>
    %cst_26 = arith.constant 9.99999974E-6 : f32
    %56 = vector.broadcast %cst_26 : f32 to vector<8x1xf32>
    %57 = arith.addf %53, %56 : vector<8x1xf32>
    %58 = math.rsqrt %57 : vector<8x1xf32>
    %59 = vector.broadcast %58 : vector<8x1xf32> to vector<8x32xf32>
    %60 = arith.mulf %55, %59 : vector<8x32xf32>
    %61 = vector.broadcast %41 : vector<1x32xf32> to vector<8x32xf32>
    %62 = arith.mulf %60, %61 : vector<8x32xf32>
    %63 = vector.broadcast %42 : vector<1x32xf32> to vector<8x32xf32>
    %64 = arith.addf %62, %63 : vector<8x32xf32>
    %65 = arith.truncf %64 : vector<8x32xf32> to vector<8x32xbf16>
    %c0_27 = arith.constant 0 : index
    %c0_28 = arith.constant 0 : index
    %66 = vector.load %arg10[%c0_27, %c0_28] : memref<32x128xbf16, #tpu.memory_space<vmem>>, vector<32x128xbf16>
    %cst_29 = arith.constant dense<0.000000e+00> : vector<8x128xf32>
    %67 = tpu.matmul %65, %66, %cst_29 {dimension_numbers = #tpu.dot_dimension_numbers<[1], [0], [0], [1], [0, 0, 1, 1], [], []>} : vector<8x32xbf16>, vector<32x128xbf16>, vector<8x128xf32> -> vector<8x128xf32>
    %c0_30 = arith.constant 0 : index
    %c0_31 = arith.constant 0 : index
    %68 = vector.load %arg11[%c0_30, %c0_31] : memref<1x128xf32, #tpu.memory_space<vmem>>, vector<1x128xf32>
    %69 = vector.broadcast %68 : vector<1x128xf32> to vector<8x128xf32>
    %70 = arith.addf %67, %69 : vector<8x128xf32>
    %71 = arith.mulf %70, %70 : vector<8x128xf32>
    %72 = arith.mulf %70, %71 : vector<8x128xf32>
    %cst_32 = arith.constant 4.471500e-02 : f32
    %73 = vector.broadcast %cst_32 : f32 to vector<8x128xf32>
    %74 = arith.mulf %73, %72 : vector<8x128xf32>
    %75 = arith.addf %70, %74 : vector<8x128xf32>
    %cst_33 = arith.constant 0.797884583 : f32
    %76 = vector.broadcast %cst_33 : f32 to vector<8x128xf32>
    %77 = arith.mulf %76, %75 : vector<8x128xf32>
    %78 = math.tanh %77 : vector<8x128xf32>
    %cst_34 = arith.constant 1.000000e+00 : f32
    %79 = vector.broadcast %cst_34 : f32 to vector<8x128xf32>
    %80 = arith.addf %79, %78 : vector<8x128xf32>
    %cst_35 = arith.constant 5.000000e-01 : f32
    %81 = vector.broadcast %cst_35 : f32 to vector<8x128xf32>
    %82 = arith.mulf %81, %80 : vector<8x128xf32>
    %83 = arith.mulf %70, %82 : vector<8x128xf32>
    %84 = arith.truncf %83 : vector<8x128xf32> to vector<8x128xbf16>
    %c0_36 = arith.constant 0 : index
    %c0_37 = arith.constant 0 : index
    %85 = vector.load %arg12[%c0_36, %c0_37] : memref<128x32xbf16, #tpu.memory_space<vmem>>, vector<128x32xbf16>
    %cst_38 = arith.constant dense<0.000000e+00> : vector<8x32xf32>
    %86 = tpu.matmul %84, %85, %cst_38 {dimension_numbers = #tpu.dot_dimension_numbers<[1], [0], [0], [1], [0, 0, 1, 1], [], []>} : vector<8x128xbf16>, vector<128x32xbf16>, vector<8x32xf32> -> vector<8x32xf32>
    %c0_39 = arith.constant 0 : index
    %c0_40 = arith.constant 0 : index
    %87 = vector.load %arg13[%c0_39, %c0_40] : memref<1x32xf32, #tpu.memory_space<vmem>>, vector<1x32xf32>
    %88 = vector.broadcast %87 : vector<1x32xf32> to vector<8x32xf32>
    %89 = arith.addf %86, %88 : vector<8x32xf32>
    %90 = arith.addf %40, %89 : vector<8x32xf32>
    %c0_41 = arith.constant 0 : index
    %c0_42 = arith.constant 0 : index
    %c0_43 = arith.constant 0 : index
    %91 = vector.load %arg14[%c0_41, %c0_42, %c0_43] : memref<1x8x32xf32, #tpu.memory_space<vmem>>, vector<1x8x32xf32>
    %92 = vector.shape_cast %91 : vector<1x8x32xf32> to vector<8x32xf32>
    %93 = vector.shape_cast %90 : vector<8x32xf32> to vector<1x8x32xf32>
    tpu.vector_store %arg14[%c0_41, %c0_42, %c0_43], %93 {strides = array<i32>} : memref<1x8x32xf32, #tpu.memory_space<vmem>>, vector<1x8x32xf32>,
    return
  }
  func.func @transform_0(%arg0: i32, %arg1: i32) -> (i32, i32, i32) {
    %c0_i32 = arith.constant 0 : i32
    %c0_i32_0 = arith.constant 0 : i32
    %c0_i32_1 = arith.constant 0 : i32
    return %arg0, %c0_i32, %c0_i32_0 : i32, i32, i32
  }
  func.func @transform_1(%arg0: i32, %arg1: i32) -> (i32, i32) {
    %c0_i32 = arith.constant 0 : i32
    %c0_i32_0 = arith.constant 0 : i32
    %c0_i32_1 = arith.constant 0 : i32
    return %c0_i32, %c0_i32_0 : i32, i32
  }
  func.func @transform_2(%arg0: i32, %arg1: i32) -> (i32, i32) {
    %c0_i32 = arith.constant 0 : i32
    %c0_i32_0 = arith.constant 0 : i32
    %c0_i32_1 = arith.constant 0 : i32
    return %c0_i32, %c0_i32_0 : i32, i32
  }
  func.func @transform_3(%arg0: i32, %arg1: i32) -> (i32, i32) {
    %c0_i32 = arith.constant 0 : i32
    %c0_i32_0 = arith.constant 0 : i32
    %c0_i32_1 = arith.constant 0 : i32
    return %c0_i32, %c0_i32_0 : i32, i32
  }
  func.func @transform_4(%arg0: i32, %arg1: i32) -> (i32, i32) {
    %c0_i32 = arith.constant 0 : i32
    %c0_i32_0 = arith.constant 0 : i32
    %c0_i32_1 = arith.constant 0 : i32
    return %c0_i32, %c0_i32_0 : i32, i32
  }
  func.func @transform_5(%arg0: i32, %arg1: i32) -> (i32, i32) {
    %c0_i32 = arith.constant 0 : i32
    %c0_i32_0 = arith.constant 0 : i32
    %c0_i32_1 = arith.constant 0 : i32
    return %c0_i32, %c0_i32_0 : i32, i32
  }
  func.func @transform_6(%arg0: i32, %arg1: i32) -> (i32, i32) {
    %c0_i32 = arith.constant 0 : i32
    %c0_i32_0 = arith.constant 0 : i32
    %c0_i32_1 = arith.constant 0 : i32
    return %c0_i32, %c0_i32_0 : i32, i32
  }
  func.func @transform_7(%arg0: i32, %arg1: i32) -> (i32, i32) {
    %c0_i32 = arith.constant 0 : i32
    %c0_i32_0 = arith.constant 0 : i32
    %c0_i32_1 = arith.constant 0 : i32
    return %c0_i32, %c0_i32_0 : i32, i32
  }
  func.func @transform_8(%arg0: i32, %arg1: i32) -> (i32, i32) {
    %c0_i32 = arith.constant 0 : i32
    %c0_i32_0 = arith.constant 0 : i32
    %c0_i32_1 = arith.constant 0 : i32
    return %c0_i32, %c0_i32_0 : i32, i32
  }
  func.func @transform_9(%arg0: i32, %arg1: i32) -> (i32, i32) {
    %c0_i32 = arith.constant 0 : i32
    %c0_i32_0 = arith.constant 0 : i32
    %c0_i32_1 = arith.constant 0 : i32
    return %c0_i32, %c0_i32_0 : i32, i32
  }
  func.func @transform_10(%arg0: i32, %arg1: i32) -> (i32, i32) {
    %c0_i32 = arith.constant 0 : i32
    %c0_i32_0 = arith.constant 0 : i32
    %c0_i32_1 = arith.constant 0 : i32
    return %c0_i32, %c0_i32_0 : i32, i32
  }
  func.func @transform_11(%arg0: i32, %arg1: i32) -> (i32, i32) {
    %c0_i32 = arith.constant 0 : i32
    %c0_i32_0 = arith.constant 0 : i32
    %c0_i32_1 = arith.constant 0 : i32
    return %c0_i32, %c0_i32_0 : i32, i32
  }
  func.func @transform_12(%arg0: i32, %arg1: i32) -> (i32, i32, i32) {
    %c0_i32 = arith.constant 0 : i32
    %c0_i32_0 = arith.constant 0 : i32
    return %arg0, %arg1, %c0_i32 : i32, i32, i32
  }
}

</mosaic_0001>

<llo_original>
// kernel: tpu_custom_call.1
$region0: #{tpu_custom_call.1}
  #allocation0 [shape = 'u32[]', space=smem, size = 0x4, offset = 0x4, fixed_abs, tag = 'smem constant byte address 0x4 - core index']
  #allocation1 [shape = 'u32[144,128]{1,0:T(1,128)}', space=vmem, size = 0x12000, scoped, tag = 'internal scratch']
  #allocation2 [shape = 'bf16[4,8,8]{2,1,0:T(8,128)(2,1)}', space=vmem, size = 0x2000, scoped, tag = 'scratch operand']
  #allocation3 [shape = 'bf16[4,8,8]{2,1,0:T(8,128)(2,1)}', space=vmem, size = 0x2000, scoped, tag = 'scratch operand']
  #allocation4 [shape = 'bf16[4,8,8]{2,1,0:T(8,128)(2,1)}', space=vmem, size = 0x2000, scoped, tag = 'scratch operand']
  %s0 = inlined_call_operand.hbm [shape: f32[2,8,32], index: 0, kind: input, shape index: {}]
  %s1 = inlined_call_operand.hbm [shape: bf16[32,96], index: 1, kind: input, shape index: {}]
  %s2 = inlined_call_operand.hbm [shape: bf16[32,32], index: 2, kind: input, shape index: {}]
  %s3 = inlined_call_operand.hbm [shape: f32[1,32], index: 3, kind: input, shape index: {}]
  %s4 = inlined_call_operand.hbm [shape: f32[1,32], index: 4, kind: input, shape index: {}]
  %s5 = inlined_call_operand.hbm [shape: f32[1,32], index: 5, kind: input, shape index: {}]
  %s6 = inlined_call_operand.hbm [shape: f32[1,32], index: 6, kind: input, shape index: {}]
  %s7 = inlined_call_operand.hbm [shape: f32[1,32], index: 7, kind: input, shape index: {}]
  %s8 = inlined_call_operand.hbm [shape: bf16[32,128], index: 8, kind: input, shape index: {}]
  %s9 = inlined_call_operand.hbm [shape: f32[1,128], index: 9, kind: input, shape index: {}]
  %s10 = inlined_call_operand.hbm [shape: bf16[128,32], index: 10, kind: input, shape index: {}]
  %s11 = inlined_call_operand.hbm [shape: f32[1,32], index: 11, kind: input, shape index: {}]
  %s12 = inlined_call_operand.hbm [shape: f32[2,8,32], index: 12, kind: output, shape index: {}]
  %s13 = sld [smem:[#allocation0]]
  $region133: #{tpu_custom_call.1} parent=0
    _
  %s15 = ssub.s32 1, %s13
  %s16 = scalar_select 0, %s15, %s13
  $region1: #{tpu_custom_call.1} parent=0
    #allocation5 [shape = 'u8[8192]{0}', space=vmem, size = 0x2000, scoped, tag = 'input window, operand 0']
    #allocation6 [shape = 's32[2]{0}', space=sflag, size = 0x8, scoped, tag = 'scoped memory for tpu_custom_call.1']
    #allocation7 [shape = 's32[2]{0}', space=sflag, size = 0x8, scoped, tag = 'scoped memory for tpu_custom_call.1']
    #allocation8 [shape = 'u8[8192]{0}', space=vmem, size = 0x2000, scoped, tag = 'input window, operand 1, single buffered']
    #allocation9 [shape = 's32[1]{0}', space=sflag, size = 0x4, scoped, tag = 'scoped memory for tpu_custom_call.1']
    #allocation10 [shape = 'u8[8192]{0}', space=vmem, size = 0x2000, scoped, tag = 'input window, operand 2, single buffered']
    #allocation11 [shape = 'u8[512]{0}', space=vmem, size = 0x400, scoped, tag = 'input window, operand 3, single buffered']
    #allocation12 [shape = 's32[1]{0}', space=sflag, size = 0x4, scoped, tag = 'scoped memory for tpu_custom_call.1']
    #allocation13 [shape = 'u8[512]{0}', space=vmem, size = 0x400, scoped, tag = 'input window, operand 4, single buffered']
    #allocation14 [shape = 'u8[512]{0}', space=vmem, size = 0x400, scoped, tag = 'input window, operand 5, single buffered']
    #allocation15 [shape = 's32[1]{0}', space=sflag, size = 0x4, scoped, tag = 'scoped memory for tpu_custom_call.1']
    #allocation16 [shape = 'u8[512]{0}', space=vmem, size = 0x400, scoped, tag = 'input window, operand 6, single buffered']
    #allocation17 [shape = 'u8[512]{0}', space=vmem, size = 0x400, scoped, tag = 'input window, operand 7, single buffered']
    #allocation18 [shape = 's32[1]{0}', space=sflag, size = 0x4, scoped, tag = 'scoped memory for tpu_custom_call.1']
    #allocation19 [shape = 'u8[8192]{0}', space=vmem, size = 0x2000, scoped, tag = 'input window, operand 8, single buffered']
    #allocation20 [shape = 'u8[512]{0}', space=vmem, size = 0x400, scoped, tag = 'input window, operand 9, single buffered']
    #allocation21 [shape = 's32[1]{0}', space=sflag, size = 0x4, scoped, tag = 'scoped memory for tpu_custom_call.1']
    #allocation22 [shape = 'u8[32768]{0}', space=vmem, size = 0x8000, scoped, tag = 'input window, operand 10, single buffered']
    #allocation23 [shape = 'u8[512]{0}', space=vmem, size = 0x400, scoped, tag = 'input window, operand 11, single buffered']
    #allocation24 [shape = 's32[1]{0}', space=sflag, size = 0x4, scoped, tag = 'scoped memory for tpu_custom_call.1']
    #allocation25 [shape = 'u8[8192]{0}', space=vmem, size = 0x2000, scoped, tag = 'output window, operand 0']
    %17 = vsyncpa [#allocation6], 0
    %s18 = scalar_lea.sflag [#allocation6], 1
    %19 = vsyncpa %s18, 0
    %20 = vsyncpa [#allocation9], 0
    %21 = vsyncpa [#allocation12], 0
    %22 = vsyncpa [#allocation15], 0
    %23 = vsyncpa [#allocation18], 0
    %24 = vsyncpa [#allocation21], 0
    %25 = vsyncpa [#allocation24], 0
    %26 = vsyncpa [#allocation7], 0
    %s27 = scalar_lea.sflag [#allocation7], 1
    %28 = vsyncpa %s27, 0
    loop: start=0, step=1, limit=4
    $region2: #{tpu_custom_call.1} parent=1 // loop_pre_header
      _
    $region3: #{tpu_custom_call.1} parent=1 // loop_header
      %s30 = sphi 0, %s34
      %p31 = scmp.ge.s32.totalorder %s30, 4
      %s37 = sphi 0, %s49
      %s38 = sphi 0, %s45
      %s39 = sphi 0, %s37
      %s40 = sphi 0, %s38
      %s41 = sphi 0, %s39
      %s42 = sphi 0, %s40
      %s52 = sphi 0, %s54
      %s55 = sphi 0, %s52
      %s56 = sphi 0, %s55
      %s72 = sphi 0, %s56
      %s76 = sphi 0, %s76
      %s78 = sphi 0, %s76
      %s79 = sphi 0, %s78
      %s93 = sphi 0, %s79
      %s97 = sphi 0, %s97
      %s99 = sphi 0, %s97
      %s100 = sphi 0, %s99
      %s114 = sphi 0, %s100
      %s118 = sphi 0, %s118
      %s120 = sphi 0, %s118
      %s121 = sphi 0, %s120
      %s135 = sphi 0, %s121
      %s139 = sphi 0, %s139
      %s141 = sphi 0, %s139
      %s142 = sphi 0, %s141
      %s156 = sphi 0, %s142
      %s160 = sphi 0, %s160
      %s162 = sphi 0, %s160
      %s163 = sphi 0, %s162
      %s177 = sphi 0, %s163
      %s181 = sphi 0, %s181
      %s183 = sphi 0, %s181
      %s184 = sphi 0, %s183
      %s198 = sphi 0, %s184
      %s202 = sphi 0, %s202
      %s204 = sphi 0, %s202
      %s205 = sphi 0, %s204
      %s219 = sphi 0, %s205
      %s223 = sphi 0, %s223
      %s225 = sphi 0, %s223
      %s226 = sphi 0, %s225
      %s240 = sphi 0, %s226
      %s244 = sphi 0, %s244
      %s246 = sphi 0, %s244
      %s247 = sphi 0, %s246
      %s261 = sphi 0, %s247
      %s265 = sphi 0, %s265
      %s267 = sphi 0, %s265
      %s268 = sphi 0, %s267
      %s282 = sphi 0, %s268
      %s286 = sphi 0, %s286
      %s288 = sphi 0, %s286
      %s289 = sphi 0, %s288
      %s303 = sphi 0, %s289
      %s311 = sphi 0, %s313
      %s314 = sphi 0, %s311
      %s315 = sphi 0, %s314
      %s331 = sphi 0, %s315
    $region4: #{tpu_custom_call.1} parent=1 // loop_header_branch
      %33 = sbr.rel (%p31) target = $region8
    $region5: #{tpu_custom_call.1} parent=1 // loop_body
      %s35 = ssub.s32 %s30, 1
      %s36 = ssub.s32 %s30, 2
      %s43 = sadd.s32 1, %s38
      %p44 = scmp.ge.s32.totalorder %s43, 1
      %s45 = scalar_select %p44, 0, %s43
      %s46 = sadd.s32 1, %s37
      %s47 = scalar_select %p44, %s46, %s37
      %p48 = scmp.ge.s32.totalorder %s47, 2
      %s49 = scalar_select %p48, 0, %s47
      %s50 = ssub.s32 %s37, %s49
      %p51 = scmp.eq.s32.totalorder %s50, 0
      %s53 = sadd.s32 %s52, 1
      %s54 = scalar_select %p51, %s52, %s53
      %p57 = pneg %p51
      %p58 = scmp.eq.s32.totalorder %s30, 1
      %p59 = por %p57, %p58
      %p60 = scmp.ne.s32.totalorder %s52, %s55
      %p61 = scmp.eq.s32.totalorder %s30, 0
      %p62 = por %p60, %p61
      %p63 = scmp.ne.s32.totalorder %s52, %s55
      %p64 = scmp.eq.s32.totalorder %s35, 1
      %p65 = por %p63, %p64
      %p66 = scmp.ne.s32.totalorder %s55, %s56
      %p67 = scmp.eq.s32.totalorder %s35, 0
      %p68 = por %p66, %p67
      %p69 = scmp.ne.s32.totalorder %s55, %s56
      %p70 = scmp.eq.s32.totalorder %s36, 1
      %p71 = por %p69, %p70
      %p73 = scmp.ne.s32.totalorder %s56, %s72
      %p74 = scmp.eq.s32.totalorder %s36, 0
      %p75 = por %p73, %p74
      %s77 = sadd.s32 %s76, 1
      %p80 = scmp.eq.s32.totalorder %s30, 1
      %p81 = scmp.ne.s32.totalorder %s76, %s78
      %p82 = scmp.eq.s32.totalorder %s30, 0
      %p83 = por %p81, %p82
      %p84 = scmp.ne.s32.totalorder %s76, %s78
      %p85 = scmp.eq.s32.totalorder %s35, 1
      %p86 = por %p84, %p85
      %p87 = scmp.ne.s32.totalorder %s78, %s79
      %p88 = scmp.eq.s32.totalorder %s35, 0
      %p89 = por %p87, %p88
      %p90 = scmp.ne.s32.totalorder %s78, %s79
      %p91 = scmp.eq.s32.totalorder %s36, 1
      %p92 = por %p90, %p91
      %p94 = scmp.ne.s32.totalorder %s79, %s93
      %p95 = scmp.eq.s32.totalorder %s36, 0
      %p96 = por %p94, %p95
      %s98 = sadd.s32 %s97, 1
      %p101 = scmp.eq.s32.totalorder %s30, 1
      %p102 = scmp.ne.s32.totalorder %s97, %s99
      %p103 = scmp.eq.s32.totalorder %s30, 0
      %p104 = por %p102, %p103
      %p105 = scmp.ne.s32.totalorder %s97, %s99
      %p106 = scmp.eq.s32.totalorder %s35, 1
      %p107 = por %p105, %p106
      %p108 = scmp.ne.s32.totalorder %s99, %s100
      %p109 = scmp.eq.s32.totalorder %s35, 0
      %p110 = por %p108, %p109
      %p111 = scmp.ne.s32.totalorder %s99, %s100
      %p112 = scmp.eq.s32.totalorder %s36, 1
      %p113 = por %p111, %p112
      %p115 = scmp.ne.s32.totalorder %s100, %s114
      %p116 = scmp.eq.s32.totalorder %s36, 0
      %p117 = por %p115, %p116
      %s119 = sadd.s32 %s118, 1
      %p122 = scmp.eq.s32.totalorder %s30, 1
      %p123 = scmp.ne.s32.totalorder %s118, %s120
      %p124 = scmp.eq.s32.totalorder %s30, 0
      %p125 = por %p123, %p124
      %p126 = scmp.ne.s32.totalorder %s118, %s120
      %p127 = scmp.eq.s32.totalorder %s35, 1
      %p128 = por %p126, %p127
      %p129 = scmp.ne.s32.totalorder %s120, %s121
      %p130 = scmp.eq.s32.totalorder %s35, 0
      %p131 = por %p129, %p130
      %p132 = scmp.ne.s32.totalorder %s120, %s121
      %p133 = scmp.eq.s32.totalorder %s36, 1
      %p134 = por %p132, %p133
      %p136 = scmp.ne.s32.totalorder %s121, %s135
      %p137 = scmp.eq.s32.totalorder %s36, 0
      %p138 = por %p136, %p137
      %s140 = sadd.s32 %s139, 1
      %p143 = scmp.eq.s32.totalorder %s30, 1
      %p144 = scmp.ne.s32.totalorder %s139, %s141
      %p145 = scmp.eq.s32.totalorder %s30, 0
      %p146 = por %p144, %p145
      %p147 = scmp.ne.s32.totalorder %s139, %s141
      %p148 = scmp.eq.s32.totalorder %s35, 1
      %p149 = por %p147, %p148
      %p150 = scmp.ne.s32.totalorder %s141, %s142
      %p151 = scmp.eq.s32.totalorder %s35, 0
      %p152 = por %p150, %p151
      %p153 = scmp.ne.s32.totalorder %s141, %s142
      %p154 = scmp.eq.s32.totalorder %s36, 1
      %p155 = por %p153, %p154
      %p157 = scmp.ne.s32.totalorder %s142, %s156
      %p158 = scmp.eq.s32.totalorder %s36, 0
      %p159 = por %p157, %p158
      %s161 = sadd.s32 %s160, 1
      %p164 = scmp.eq.s32.totalorder %s30, 1
      %p165 = scmp.ne.s32.totalorder %s160, %s162
      %p166 = scmp.eq.s32.totalorder %s30, 0
      %p167 = por %p165, %p166
      %p168 = scmp.ne.s32.totalorder %s160, %s162
      %p169 = scmp.eq.s32.totalorder %s35, 1
      %p170 = por %p168, %p169
      %p171 = scmp.ne.s32.totalorder %s162, %s163
      %p172 = scmp.eq.s32.totalorder %s35, 0
      %p173 = por %p171, %p172
      %p174 = scmp.ne.s32.totalorder %s162, %s163
      %p175 = scmp.eq.s32.totalorder %s36, 1
      %p176 = por %p174, %p175
      %p178 = scmp.ne.s32.totalorder %s163, %s177
      %p179 = scmp.eq.s32.totalorder %s36, 0
      %p180 = por %p178, %p179
      %s182 = sadd.s32 %s181, 1
      %p185 = scmp.eq.s32.totalorder %s30, 1
      %p186 = scmp.ne.s32.totalorder %s181, %s183
      %p187 = scmp.eq.s32.totalorder %s30, 0
      %p188 = por %p186, %p187
      %p189 = scmp.ne.s32.totalorder %s181, %s183
      %p190 = scmp.eq.s32.totalorder %s35, 1
      %p191 = por %p189, %p190
      %p192 = scmp.ne.s32.totalorder %s183, %s184
      %p193 = scmp.eq.s32.totalorder %s35, 0
      %p194 = por %p192, %p193
      %p195 = scmp.ne.s32.totalorder %s183, %s184
      %p196 = scmp.eq.s32.totalorder %s36, 1
      %p197 = por %p195, %p196
      %p199 = scmp.ne.s32.totalorder %s184, %s198
      %p200 = scmp.eq.s32.totalorder %s36, 0
      %p201 = por %p199, %p200
      %s203 = sadd.s32 %s202, 1
      %p206 = scmp.eq.s32.totalorder %s30, 1
      %p207 = scmp.ne.s32.totalorder %s202, %s204
      %p208 = scmp.eq.s32.totalorder %s30, 0
      %p209 = por %p207, %p208
      %p210 = scmp.ne.s32.totalorder %s202, %s204
      %p211 = scmp.eq.s32.totalorder %s35, 1
      %p212 = por %p210, %p211
      %p213 = scmp.ne.s32.totalorder %s204, %s205
      %p214 = scmp.eq.s32.totalorder %s35, 0
      %p215 = por %p213, %p214
      %p216 = scmp.ne.s32.totalorder %s204, %s205
      %p217 = scmp.eq.s32.totalorder %s36, 1
      %p218 = por %p216, %p217
      %p220 = scmp.ne.s32.totalorder %s205, %s219
      %p221 = scmp.eq.s32.totalorder %s36, 0
      %p222 = por %p220, %p221
      %s224 = sadd.s32 %s223, 1
      %p227 = scmp.eq.s32.totalorder %s30, 1
      %p228 = scmp.ne.s32.totalorder %s223, %s225
      %p229 = scmp.eq.s32.totalorder %s30, 0
      %p230 = por %p228, %p229
      %p231 = scmp.ne.s32.totalorder %s223, %s225
      %p232 = scmp.eq.s32.totalorder %s35, 1
      %p233 = por %p231, %p232
      %p234 = scmp.ne.s32.totalorder %s225, %s226
      %p235 = scmp.eq.s32.totalorder %s35, 0
      %p236 = por %p234, %p235
      %p237 = scmp.ne.s32.totalorder %s225, %s226
      %p238 = scmp.eq.s32.totalorder %s36, 1
      %p239 = por %p237, %p238
      %p241 = scmp.ne.s32.totalorder %s226, %s240
      %p242 = scmp.eq.s32.totalorder %s36, 0
      %p243 = por %p241, %p242
      %s245 = sadd.s32 %s244, 1
      %p248 = scmp.eq.s32.totalorder %s30, 1
      %p249 = scmp.ne.s32.totalorder %s244, %s246
      %p250 = scmp.eq.s32.totalorder %s30, 0
      %p251 = por %p249, %p250
      %p252 = scmp.ne.s32.totalorder %s244, %s246
      %p253 = scmp.eq.s32.totalorder %s35, 1
      %p254 = por %p252, %p253
      %p255 = scmp.ne.s32.totalorder %s246, %s247
      %p256 = scmp.eq.s32.totalorder %s35, 0
      %p257 = por %p255, %p256
      %p258 = scmp.ne.s32.totalorder %s246, %s247
      %p259 = scmp.eq.s32.totalorder %s36, 1
      %p260 = por %p258, %p259
      %p262 = scmp.ne.s32.totalorder %s247, %s261
      %p263 = scmp.eq.s32.totalorder %s36, 0
      %p264 = por %p262, %p263
      %s266 = sadd.s32 %s265, 1
      %p269 = scmp.eq.s32.totalorder %s30, 1
      %p270 = scmp.ne.s32.totalorder %s265, %s267
      %p271 = scmp.eq.s32.totalorder %s30, 0
      %p272 = por %p270, %p271
      %p273 = scmp.ne.s32.totalorder %s265, %s267
      %p274 = scmp.eq.s32.totalorder %s35, 1
      %p275 = por %p273, %p274
      %p276 = scmp.ne.s32.totalorder %s267, %s268
      %p277 = scmp.eq.s32.totalorder %s35, 0
      %p278 = por %p276, %p277
      %p279 = scmp.ne.s32.totalorder %s267, %s268
      %p280 = scmp.eq.s32.totalorder %s36, 1
      %p281 = por %p279, %p280
      %p283 = scmp.ne.s32.totalorder %s268, %s282
      %p284 = scmp.eq.s32.totalorder %s36, 0
      %p285 = por %p283, %p284
      %s287 = sadd.s32 %s286, 1
      %p290 = scmp.eq.s32.totalorder %s30, 1
      %p291 = scmp.ne.s32.totalorder %s286, %s288
      %p292 = scmp.eq.s32.totalorder %s30, 0
      %p293 = por %p291, %p292
      %p294 = scmp.ne.s32.totalorder %s286, %s288
      %p295 = scmp.eq.s32.totalorder %s35, 1
      %p296 = por %p294, %p295
      %p297 = scmp.ne.s32.totalorder %s288, %s289
      %p298 = scmp.eq.s32.totalorder %s35, 0
      %p299 = por %p297, %p298
      %p300 = scmp.ne.s32.totalorder %s288, %s289
      %p301 = scmp.eq.s32.totalorder %s36, 1
      %p302 = por %p300, %p301
      %p304 = scmp.ne.s32.totalorder %s289, %s303
      %p305 = scmp.eq.s32.totalorder %s36, 0
      %p306 = por %p304, %p305
      %s307 = ssub.s32 %s37, %s49
      %s308 = ssub.s32 %s38, %s45
      %s309 = sor.u32 %s307, %s308
      %p310 = scmp.eq.s32.totalorder %s309, 0
      %s312 = sadd.s32 %s311, 1
      %s313 = scalar_select %p310, %s311, %s312
      %p316 = pneg %p310
      %p317 = scmp.eq.s32.totalorder %s30, 1
      %p318 = por %p316, %p317
      %p319 = scmp.ne.s32.totalorder %s311, %s314
      %p320 = scmp.eq.s32.totalorder %s30, 0
      %p321 = por %p319, %p320
      %p322 = scmp.ne.s32.totalorder %s311, %s314
      %p323 = scmp.eq.s32.totalorder %s35, 1
      %p324 = por %p322, %p323
      %p325 = scmp.ne.s32.totalorder %s314, %s315
      %p326 = scmp.eq.s32.totalorder %s35, 0
      %p327 = por %p325, %p326
      %p328 = scmp.ne.s32.totalorder %s314, %s315
      %p329 = scmp.eq.s32.totalorder %s36, 1
      %p330 = por %p328, %p329
      %p332 = scmp.ne.s32.totalorder %s315, %s331
      %p333 = scmp.eq.s32.totalorder %s36, 0
      %p334 = por %p332, %p333
      %p335 = scmp.le.s32.totalorder 1, %s30
      %p336 = scmp.lt.s32.totalorder %s30, 3
      %p337 = pnand %p335, %p336
      %p338 = pneg %p337
      // Predicated region
      $region9: #{tpu_custom_call.1} parent=5 // pred_check
        _
      $region10: #{tpu_custom_call.1} parent=5 // pred_check_branch
        %340 = sbr.rel (%p337) target = $region12
      $region11: #{tpu_custom_call.1} parent=5 // pred_region
        %s341 = ssub.s32 %s30, 1
        // Predicated region
        $region13: #{tpu_custom_call.1} parent=11 // pred_check
          %p342 = pneg %p89
        $region14: #{tpu_custom_call.1} parent=11 // pred_check_branch
          %344 = sbr.rel (%p342) target = $region16
        $region15: #{tpu_custom_call.1} parent=11 // pred_region
          %s346 = ssub.s32 256, 256
          %347 = vsyncadd [#allocation9], %s346
          %s348 = sshll.u32 [#allocation8], 4
          %s349 = int_to_ptr.vmem [resolvable:$true] %s348
          %354 = dma.hbm_to_vmem [thread:$0]  %s1, 256, %s349, [#allocation9], 64, 64, 4
        $region16: #{tpu_custom_call.1} parent=11 // pred_fallthru
          _
        // Predicated region
        $region17: #{tpu_custom_call.1} parent=11 // pred_check
          %p355 = pneg %p110
        $region18: #{tpu_custom_call.1} parent=11 // pred_check_branch
          %357 = sbr.rel (%p355) target = $region20
        $region19: #{tpu_custom_call.1} parent=11 // pred_region
          %s359 = ssub.s32 256, 256
          %360 = vsyncadd [#allocation9], %s359
          %s361 = sshll.u32 [#allocation10], 4
          %s362 = int_to_ptr.vmem [resolvable:$true] %s361
          %367 = dma.hbm_to_vmem [thread:$0]  %s2, 256, %s362, [#allocation9], 64, 64, 4
        $region20: #{tpu_custom_call.1} parent=11 // pred_fallthru
          _
        // Predicated region
        $region21: #{tpu_custom_call.1} parent=11 // pred_check
          %p368 = pneg %p131
        $region22: #{tpu_custom_call.1} parent=11 // pred_check_branch
          %370 = sbr.rel (%p368) target = $region24
        $region23: #{tpu_custom_call.1} parent=11 // pred_region
          %s372 = ssub.s32 16, 16
          %373 = vsyncadd [#allocation12], %s372
          %s375 = sshll.u32 [#allocation11], 4
          %s376 = int_to_ptr.vmem [resolvable:$true] %s375
          %378 = dma.hbm_to_vmem [thread:$0]  %s3, 16, %s376, [#allocation12]
        $region24: #{tpu_custom_call.1} parent=11 // pred_fallthru
          _
        // Predicated region
        $region25: #{tpu_custom_call.1} parent=11 // pred_check
          %p379 = pneg %p152
        $region26: #{tpu_custom_call.1} parent=11 // pred_check_branch
          %381 = sbr.rel (%p379) target = $region28
        $region27: #{tpu_custom_call.1} parent=11 // pred_region
          %s383 = ssub.s32 16, 16
          %384 = vsyncadd [#allocation12], %s383
          %s386 = sshll.u32 [#allocation13], 4
          %s387 = int_to_ptr.vmem [resolvable:$true] %s386
          %389 = dma.hbm_to_vmem [thread:$0]  %s4, 16, %s387, [#allocation12]
        $region28: #{tpu_custom_call.1} parent=11 // pred_fallthru
          _
        // Predicated region
        $region29: #{tpu_custom_call.1} parent=11 // pred_check
          %p390 = pneg %p173
        $region30: #{tpu_custom_call.1} parent=11 // pred_check_branch
          %392 = sbr.rel (%p390) target = $region32
        $region31: #{tpu_custom_call.1} parent=11 // pred_region
          %s394 = ssub.s32 16, 16
          %395 = vsyncadd [#allocation15], %s394
          %s397 = sshll.u32 [#allocation14], 4
          %s398 = int_to_ptr.vmem [resolvable:$true] %s397
          %400 = dma.hbm_to_vmem [thread:$0]  %s5, 16, %s398, [#allocation15]
        $region32: #{tpu_custom_call.1} parent=11 // pred_fallthru
          _
        // Predicated region
        $region33: #{tpu_custom_call.1} parent=11 // pred_check
          %p401 = pneg %p194
        $region34: #{tpu_custom_call.1} parent=11 // pred_check_branch
          %403 = sbr.rel (%p401) target = $region36
        $region35: #{tpu_custom_call.1} parent=11 // pred_region
          %s405 = ssub.s32 16, 16
          %406 = vsyncadd [#allocation15], %s405
          %s408 = sshll.u32 [#allocation16], 4
          %s409 = int_to_ptr.vmem [resolvable:$true] %s408
          %411 = dma.hbm_to_vmem [thread:$0]  %s6, 16, %s409, [#allocation15]
        $region36: #{tpu_custom_call.1} parent=11 // pred_fallthru
          _
        // Predicated region
        $region37: #{tpu_custom_call.1} parent=11 // pred_check
          %p412 = pneg %p215
        $region38: #{tpu_custom_call.1} parent=11 // pred_check_branch
          %414 = sbr.rel (%p412) target = $region40
        $region39: #{tpu_custom_call.1} parent=11 // pred_region
          %s416 = ssub.s32 16, 16
          %417 = vsyncadd [#allocation18], %s416
          %s419 = sshll.u32 [#allocation17], 4
          %s420 = int_to_ptr.vmem [resolvable:$true] %s419
          %422 = dma.hbm_to_vmem [thread:$0]  %s7, 16, %s420, [#allocation18]
        $region40: #{tpu_custom_call.1} parent=11 // pred_fallthru
          _
        // Predicated region
        $region41: #{tpu_custom_call.1} parent=11 // pred_check
          %p423 = pneg %p236
        $region42: #{tpu_custom_call.1} parent=11 // pred_check_branch
          %425 = sbr.rel (%p423) target = $region44
        $region43: #{tpu_custom_call.1} parent=11 // pred_region
          %s427 = ssub.s32 256, 256
          %428 = vsyncadd [#allocation18], %s427
          %s429 = sshll.u32 [#allocation19], 4
          %s430 = int_to_ptr.vmem [resolvable:$true] %s429
          %435 = dma.hbm_to_vmem [thread:$0]  %s8, 256, %s430, [#allocation18], 64, 64, 4
        $region44: #{tpu_custom_call.1} parent=11 // pred_fallthru
          _
        // Predicated region
        $region45: #{tpu_custom_call.1} parent=11 // pred_check
          %p436 = pneg %p257
        $region46: #{tpu_custom_call.1} parent=11 // pred_check_branch
          %438 = sbr.rel (%p436) target = $region48
        $region47: #{tpu_custom_call.1} parent=11 // pred_region
          %s440 = ssub.s32 16, 16
          %441 = vsyncadd [#allocation21], %s440
          %s443 = sshll.u32 [#allocation20], 4
          %s444 = int_to_ptr.vmem [resolvable:$true] %s443
          %446 = dma.hbm_to_vmem [thread:$0]  %s9, 16, %s444, [#allocation21]
        $region48: #{tpu_custom_call.1} parent=11 // pred_fallthru
          _
        // Predicated region
        $region49: #{tpu_custom_call.1} parent=11 // pred_check
          %p447 = pneg %p278
        $region50: #{tpu_custom_call.1} parent=11 // pred_check_branch
          %449 = sbr.rel (%p447) target = $region52
        $region51: #{tpu_custom_call.1} parent=11 // pred_region
          %s451 = ssub.s32 1024, 1024
          %452 = vsyncadd [#allocation21], %s451
          %s453 = sshll.u32 [#allocation22], 4
          %s454 = int_to_ptr.vmem [resolvable:$true] %s453
          %459 = dma.hbm_to_vmem [thread:$0]  %s10, 1024, %s454, [#allocation21], 64, 64, 4
        $region52: #{tpu_custom_call.1} parent=11 // pred_fallthru
          _
        // Predicated region
        $region53: #{tpu_custom_call.1} parent=11 // pred_check
          %p460 = pneg %p299
        $region54: #{tpu_custom_call.1} parent=11 // pred_check_branch
          %462 = sbr.rel (%p460) target = $region56
        $region55: #{tpu_custom_call.1} parent=11 // pred_region
          %s464 = ssub.s32 16, 16
          %465 = vsyncadd [#allocation24], %s464
          %s467 = sshll.u32 [#allocation23], 4
          %s468 = int_to_ptr.vmem [resolvable:$true] %s467
          %470 = dma.hbm_to_vmem [thread:$0]  %s11, 16, %s468, [#allocation24]
        $region56: #{tpu_custom_call.1} parent=11 // pred_fallthru
          _
      $region12: #{tpu_custom_call.1} parent=5 // pred_fallthru
        _
      %p471 = scmp.lt.s32.totalorder %s30, 2
      // Predicated region
      $region57: #{tpu_custom_call.1} parent=5 // pred_check
        %p472 = pneg %p471
      $region58: #{tpu_custom_call.1} parent=5 // pred_check_branch
        %474 = sbr.rel (%p472) target = $region60
      $region59: #{tpu_custom_call.1} parent=5 // pred_region
        // Predicated region
        $region61: #{tpu_custom_call.1} parent=59 // pred_check
          %p475 = pneg %p62
        $region62: #{tpu_custom_call.1} parent=59 // pred_check_branch
          %477 = sbr.rel (%p475) target = $region64
        $region63: #{tpu_custom_call.1} parent=59 // pred_region
          %s478 = sand.u32 %s52, 1
          %s479 = scalar_lea.sflag [#allocation6], %s478
          %s480 = sand.u32 %s52, 1
          %s481 = smul.addr %s480, 8
          %s482 = scalar_lea.vmem [#allocation5], %s481
          %s484 = ssub.s32 128, 128
          %485 = vsyncadd %s479, %s484
          %s486 = smul.addr %s37, 128
          %s487 = scalar_lea.hbm %s0, %s486
          %s489 = sshll.u32 %s482, 4
          %s490 = int_to_ptr.vmem [resolvable:$true] %s489
          %492 = dma.hbm_to_vmem [thread:$0]  %s487, 128, %s490, %s479
        $region64: #{tpu_custom_call.1} parent=59 // pred_fallthru
          _
      $region60: #{tpu_custom_call.1} parent=5 // pred_fallthru
        _
      %p493 = scmp.le.s32.totalorder 1, %s30
      %p494 = scmp.lt.s32.totalorder %s30, 3
      %p495 = pnand %p493, %p494
      %p496 = pneg %p495
      // Predicated region
      $region65: #{tpu_custom_call.1} parent=5 // pred_check
        _
      $region66: #{tpu_custom_call.1} parent=5 // pred_check_branch
        %498 = sbr.rel (%p495) target = $region68
      $region67: #{tpu_custom_call.1} parent=5 // pred_region
        %s499 = ssub.s32 %s30, 1
        %s500 = sand.u32 %s55, 1
        %s501 = scalar_lea.sflag [#allocation6], %s500
        %s502 = sand.u32 %s55, 1
        %s503 = smul.addr %s502, 8
        %s504 = scalar_lea.vmem [#allocation5], %s503
        // Predicated region
        $region69: #{tpu_custom_call.1} parent=67 // pred_check
          %p505 = pneg %p68
        $region70: #{tpu_custom_call.1} parent=67 // pred_check_branch
          %507 = sbr.rel (%p505) target = $region72
        $region71: #{tpu_custom_call.1} parent=67 // pred_region
          %508 = dma.done %s501, 128
        $region72: #{tpu_custom_call.1} parent=67 // pred_fallthru
          _
        // Predicated region
        $region73: #{tpu_custom_call.1} parent=67 // pred_check
          %p509 = pneg %p89
        $region74: #{tpu_custom_call.1} parent=67 // pred_check_branch
          %511 = sbr.rel (%p509) target = $region76
        $region75: #{tpu_custom_call.1} parent=67 // pred_region
          %512 = dma.done [#allocation9], 256
        $region76: #{tpu_custom_call.1} parent=67 // pred_fallthru
          _
        // Predicated region
        $region77: #{tpu_custom_call.1} parent=67 // pred_check
          %p513 = pneg %p110
        $region78: #{tpu_custom_call.1} parent=67 // pred_check_branch
          %515 = sbr.rel (%p513) target = $region80
        $region79: #{tpu_custom_call.1} parent=67 // pred_region
          %516 = dma.done [#allocation9], 256
        $region80: #{tpu_custom_call.1} parent=67 // pred_fallthru
          _
        // Predicated region
        $region81: #{tpu_custom_call.1} parent=67 // pred_check
          %p517 = pneg %p131
        $region82: #{tpu_custom_call.1} parent=67 // pred_check_branch
          %519 = sbr.rel (%p517) target = $region84
        $region83: #{tpu_custom_call.1} parent=67 // pred_region
          %520 = dma.done [#allocation12], 16
        $region84: #{tpu_custom_call.1} parent=67 // pred_fallthru
          _
        // Predicated region
        $region85: #{tpu_custom_call.1} parent=67 // pred_check
          %p521 = pneg %p152
        $region86: #{tpu_custom_call.1} parent=67 // pred_check_branch
          %523 = sbr.rel (%p521) target = $region88
        $region87: #{tpu_custom_call.1} parent=67 // pred_region
          %524 = dma.done [#allocation12], 16
        $region88: #{tpu_custom_call.1} parent=67 // pred_fallthru
          _
        // Predicated region
        $region89: #{tpu_custom_call.1} parent=67 // pred_check
          %p525 = pneg %p173
        $region90: #{tpu_custom_call.1} parent=67 // pred_check_branch
          %527 = sbr.rel (%p525) target = $region92
        $region91: #{tpu_custom_call.1} parent=67 // pred_region
          %528 = dma.done [#allocation15], 16
        $region92: #{tpu_custom_call.1} parent=67 // pred_fallthru
          _
        // Predicated region
        $region93: #{tpu_custom_call.1} parent=67 // pred_check
          %p529 = pneg %p194
        $region94: #{tpu_custom_call.1} parent=67 // pred_check_branch
          %531 = sbr.rel (%p529) target = $region96
        $region95: #{tpu_custom_call.1} parent=67 // pred_region
          %532 = dma.done [#allocation15], 16
        $region96: #{tpu_custom_call.1} parent=67 // pred_fallthru
          _
        // Predicated region
        $region97: #{tpu_custom_call.1} parent=67 // pred_check
          %p533 = pneg %p215
        $region98: #{tpu_custom_call.1} parent=67 // pred_check_branch
          %535 = sbr.rel (%p533) target = $region100
        $region99: #{tpu_custom_call.1} parent=67 // pred_region
          %536 = dma.done [#allocation18], 16
        $region100: #{tpu_custom_call.1} parent=67 // pred_fallthru
          _
        // Predicated region
        $region101: #{tpu_custom_call.1} parent=67 // pred_check
          %p537 = pneg %p236
        $region102: #{tpu_custom_call.1} parent=67 // pred_check_branch
          %539 = sbr.rel (%p537) target = $region104
        $region103: #{tpu_custom_call.1} parent=67 // pred_region
          %540 = dma.done [#allocation18], 256
        $region104: #{tpu_custom_call.1} parent=67 // pred_fallthru
          _
        // Predicated region
        $region105: #{tpu_custom_call.1} parent=67 // pred_check
          %p541 = pneg %p257
        $region106: #{tpu_custom_call.1} parent=67 // pred_check_branch
          %543 = sbr.rel (%p541) target = $region108
        $region107: #{tpu_custom_call.1} parent=67 // pred_region
          %544 = dma.done [#allocation21], 16
        $region108: #{tpu_custom_call.1} parent=67 // pred_fallthru
          _
        // Predicated region
        $region109: #{tpu_custom_call.1} parent=67 // pred_check
          %p545 = pneg %p278
        $region110: #{tpu_custom_call.1} parent=67 // pred_check_branch
          %547 = sbr.rel (%p545) target = $region112
        $region111: #{tpu_custom_call.1} parent=67 // pred_region
          %548 = dma.done [#allocation21], 1024
        $region112: #{tpu_custom_call.1} parent=67 // pred_fallthru
          _
        // Predicated region
        $region113: #{tpu_custom_call.1} parent=67 // pred_check
          %p549 = pneg %p299
        $region114: #{tpu_custom_call.1} parent=67 // pred_check_branch
          %551 = sbr.rel (%p549) target = $region116
        $region115: #{tpu_custom_call.1} parent=67 // pred_region
          %552 = dma.done [#allocation24], 16
        $region116: #{tpu_custom_call.1} parent=67 // pred_fallthru
          _
        %s553 = sand.u32 %s55, 1
        %s554 = scalar_lea.sflag [#allocation6], %s553
        %s555 = sand.u32 %s55, 1
        %s556 = smul.addr %s555, 8
        %s557 = scalar_lea.vmem [#allocation5], %s556
        %p558 = pneg %p68
        %p559 = pneg %p65
        %p560 = pneg %p89
        %p561 = pneg %p86
        %p562 = pneg %p110
        %p563 = pneg %p107
        %p564 = pneg %p131
        %p565 = pneg %p128
        %p566 = pneg %p152
        %p567 = pneg %p149
        %p568 = pneg %p173
        %p569 = pneg %p170
        %p570 = pneg %p194
        %p571 = pneg %p191
        %p572 = pneg %p215
        %p573 = pneg %p212
        %p574 = pneg %p236
        %p575 = pneg %p233
        %p576 = pneg %p257
        %p577 = pneg %p254
        %p578 = pneg %p278
        %p579 = pneg %p275
        %p580 = pneg %p299
        %p581 = pneg %p296
        %p582 = pneg %p327
        %p583 = pneg %p324
        %s584 = sand.u32 %s314, 1
        %s585 = scalar_lea.sflag [#allocation7], %s584
        %s586 = sand.u32 %s314, 1
        %s587 = smul.addr %s586, 8
        %s588 = scalar_lea.vmem [#allocation25], %s587
        %p590 = scmp.eq.s32.totalorder %s40, 0
        // Predicated region
        $region117: #{tpu_custom_call.1} parent=67 // pred_check
          %p591 = pneg %p590
        $region118: #{tpu_custom_call.1} parent=67 // pred_check_branch
          %593 = sbr.rel (%p591) target = $region120
        $region119: #{tpu_custom_call.1} parent=67 // pred_region
          %v594 = vld [vmem:[%s504] sm:$0xff]
          %v595 = vld [vmem:[#allocation13] sm:$0x1]
          %v596 = vld [vmem:[#allocation14] sm:$0x1]
          %vm597 = vcmask 261120
          %v598 = vsel %vm597, %v594, 0.0
          %599 = vadd.xlane.f32.xlu0 %v598
          %v600 = vpop.xlane.xlu0 %599
          %v601 = vrcp.pop 32.0
          %v602 = vmul.f32 %v600, %v601
          %v603 = vsub.f32 %v594, %v602
          %v604 = vmul.f32 %v603, %v603
          %v605 = vsel %vm597, %v604, 0.0
          %606 = vadd.xlane.f32.xlu0 %v605
          %v607 = vpop.xlane.xlu0 %606
          %v608 = vmul.f32 %v607, %v601
          %v609 = vadd.f32 %v608, 1e-05
          %v610 = vrsqrt.pop %v609
          %v611 = vmul.f32 %v603, %v610
          %v613 = vlaneseq
          %v614 = vshrl.u32 %v613, 7
          %v615 = vsub.s32 0, %v614
          %v616 = vrot.slane %v595, %v615
          %v618 = vmul.f32 %v611, %v616
          %v620 = vlaneseq
          %v621 = vshrl.u32 %v620, 7
          %v622 = vsub.s32 0, %v621
          %v623 = vrot.slane %v596, %v622
          %v625 = vadd.f32 %v618, %v623
          %v626 = vpack.c.bf16 %v625, %v625
          %v627 = vld [vmem:[#allocation8] sm:$0xf]
          %v628 = vld [vmem:[#allocation8 + $0x4] sm:$0xf]
          %v629 = vld [vmem:[#allocation8 + $0x8] sm:$0xf]
          %v630 = vld [vmem:[#allocation8 + $0xc] sm:$0xf]
          %v635 = vunpack.c.l.b16 %v627
          %v636 = vunpack.c.l.b16 %v628
          %v637 = vunpack.c.l.b16 %v629
          %v638 = vunpack.c.l.b16 %v630
          %v639 = vpack.c.b16 %v636, %v635
          %v640 = vpack.c.b16 %v638, %v637
          %v644 = vsel %vm597, %v626, 0
          %646 = vmatprep.subr.bf16.mxu0 0
          %647 = vmatpush1.bf16.msra.mxu0 %v639
          %648 = vmatprep.subr.bf16.mxu0 0
          %649 = vmatpush1.bf16.msra.mxu0 %v640
          %650 = vmatprep.subr.bf16.mxu0 0
          %651 = vmatpush1.bf16.msra.mxu0 0
          %652 = vmatprep.subr.bf16.mxu0 0
          %653 = vmatpush1.bf16.msra.mxu0 0
          %654 = vmatprep.subr.bf16.mxu0 0
          %655 = vmatpush1.bf16.msra.mxu0 0
          %656 = vmatprep.subr.bf16.mxu0 0
          %657 = vmatpush1.bf16.msra.mxu0 0
          %658 = vmatprep.subr.bf16.mxu0 0
          %659 = vmatpush1.bf16.msra.mxu0 0
          %660 = vmatprep.subr.bf16.mxu0 0
          %661 = vmatpush1.bf16.msra.mxu0 0
          %662 = vmatprep.subr.bf16.mxu0 0
          %663 = vmatpush1.bf16.msra.mxu0 0
          %664 = vmatprep.subr.bf16.mxu0 0
          %665 = vmatpush1.bf16.msra.mxu0 0
          %666 = vmatprep.subr.bf16.mxu0 0
          %667 = vmatpush1.bf16.msra.mxu0 0
          %668 = vmatprep.subr.bf16.mxu0 0
          %669 = vmatpush1.bf16.msra.mxu0 0
          %670 = vmatprep.subr.bf16.mxu0 0
          %671 = vmatpush1.bf16.msra.mxu0 0
          %672 = vmatprep.subr.bf16.mxu0 0
          %673 = vmatpush1.bf16.msra.mxu0 0
          %674 = vmatprep.subr.bf16.mxu0 0
          %675 = vmatpush1.bf16.msra.mxu0 0
          %676 = vmatprep.subr.bf16.mxu0 0
          %677 = vmatpush1.bf16.msra.mxu0 0
          %678 = vmatprep.mubr.bf16.mxu0 0
          %679 = vmatmul.mubr.bf16.gmra.mrb[0].mxu0 %v644
          %v680 = vpop.f32.mrb[0].mxu0
          %v681 = vadd.f32 0.0, %v680
          %v682 = vpop.f32.mrb[0].mxu0
          %v683 = vpop.f32.mrb[0].mxu0
          %v684 = vpop.f32.mrb[0].mxu0
          %685 = vdwg.mxu0
          %v686 = vmul.f32 %v681, 0.35355338
          %v687 = vpack.c.bf16 %v686, %v686
          %vm688 = vcmask 60416
          %689 = vst.msk [vmem:[#allocation2] sm:$0xf] %vm688, %v687
          %v690 = vpack.c.bf16 %v681, %v681
          %v692 = vunpack.c.l.b16 %v690
          %v693 = vpack.c.b16 %v692, %v692
          %694 = vrot.lane.b32.xlu0 %v693, 96
          %v695 = vpop.permute.xlu0 %694
          %697 = vst.msk [vmem:[#allocation3] sm:$0xf] %vm688, %v695
          %698 = vrot.lane.b32.xlu0 %v693, 64
          %v699 = vpop.permute.xlu0 %698
          %701 = vst.msk [vmem:[#allocation4] sm:$0xf] %vm688, %v699
          %v703 = vunpack.c.l.b16 %v687
          %v704 = vpack.c.b16 %v703, %v703
          %705 = vrot.lane.b32.xlu0 %v704, 120
          %v706 = vpop.permute.xlu0 %705
          %s708 = scalar_lea.vmem [#allocation2], 4
          %709 = vst.msk [vmem:[%s708] sm:$0xf] %vm688, %v706
          %710 = vrot.lane.b32.xlu0 %v693, 88
          %v711 = vpop.permute.xlu0 %710
          %s713 = scalar_lea.vmem [#allocation3], 4
          %714 = vst.msk [vmem:[%s713] sm:$0xf] %vm688, %v711
          %715 = vrot.lane.b32.xlu0 %v693, 56
          %v716 = vpop.permute.xlu0 %715
          %s718 = scalar_lea.vmem [#allocation4], 4
          %719 = vst.msk [vmem:[%s718] sm:$0xf] %vm688, %v716
          %720 = vrot.lane.b32.xlu0 %v704, 112
          %v721 = vpop.permute.xlu0 %720
          %s723 = scalar_lea.vmem [#allocation2], 8
          %724 = vst.msk [vmem:[%s723] sm:$0xf] %vm688, %v721
          %725 = vrot.lane.b32.xlu0 %v693, 80
          %v726 = vpop.permute.xlu0 %725
          %s728 = scalar_lea.vmem [#allocation3], 8
          %729 = vst.msk [vmem:[%s728] sm:$0xf] %vm688, %v726
          %730 = vrot.lane.b32.xlu0 %v693, 48
          %v731 = vpop.permute.xlu0 %730
          %s733 = scalar_lea.vmem [#allocation4], 8
          %734 = vst.msk [vmem:[%s733] sm:$0xf] %vm688, %v731
          %735 = vrot.lane.b32.xlu0 %v704, 104
          %v736 = vpop.permute.xlu0 %735
          %s738 = scalar_lea.vmem [#allocation2], 12
          %739 = vst.msk [vmem:[%s738] sm:$0xf] %vm688, %v736
          %740 = vrot.lane.b32.xlu0 %v693, 72
          %v741 = vpop.permute.xlu0 %740
          %s743 = scalar_lea.vmem [#allocation3], 12
          %744 = vst.msk [vmem:[%s743] sm:$0xf] %vm688, %v741
          %745 = vrot.lane.b32.xlu0 %v693, 40
          %v746 = vpop.permute.xlu0 %745
          %s748 = scalar_lea.vmem [#allocation4], 12
          %749 = vst.msk [vmem:[%s748] sm:$0xf] %vm688, %v746
        $region120: #{tpu_custom_call.1} parent=67 // pred_fallthru
          _
        %s750 = smul.u32 %s40, 8
        %s751 = scalar_lea.vmem %s504, %s750 [#allocation5]
        %v752 = vld [vmem:[%s751] sm:$0xff]
        %s753 = sshra.s32 %s750, 3
        %s754 = sand.u32 %s750, 7
        %s755 = smul.addr %s753, 4
        %s756 = scalar_lea.vmem [#allocation2], %s755
        %v757 = vld [vmem:[%s756] sm:$0xf]
        %v758 = vld [vmem:[%s756 + $0x4] sm:$0xf]
        %v759 = vld [vmem:[%s756 + $0x8] sm:$0xf]
        %v760 = vld [vmem:[%s756 + $0xc] sm:$0xf]
        %v761 = vld [vmem:[#allocation3] sm:$0xf]
        %v762 = vld [vmem:[#allocation3 + $0x4] sm:$0xf]
        %v763 = vld [vmem:[#allocation3 + $0x8] sm:$0xf]
        %v764 = vld [vmem:[#allocation3 + $0xc] sm:$0xf]
        %v765 = vld [vmem:[#allocation4] sm:$0xf]
        %v766 = vld [vmem:[#allocation4 + $0x4] sm:$0xf]
        %v767 = vld [vmem:[#allocation4 + $0x8] sm:$0xf]
        %v768 = vld [vmem:[#allocation4 + $0xc] sm:$0xf]
        %vm769 = vcmask 64512
        %v771 = vsel %vm769, %v757, 0
        %v774 = vsel %vm769, %v761, 0
        %776 = vmatprep.subr.bf16.mxu0 0
        %777 = vmatpush1.bf16.xpose.msra.mxu0 %v774
        %778 = vmatprep.subr.bf16.mxu0 0
        %779 = vmatpush1.bf16.xpose.msra.mxu0 0
        %780 = vmatprep.subr.bf16.mxu0 0
        %781 = vmatpush1.bf16.xpose.msra.mxu0 0
        %782 = vmatprep.subr.bf16.mxu0 0
        %783 = vmatpush1.bf16.xpose.msra.mxu0 0
        %784 = vmatprep.subr.bf16.mxu0 0
        %785 = vmatpush1.bf16.xpose.msra.mxu0 0
        %786 = vmatprep.subr.bf16.mxu0 0
        %787 = vmatpush1.bf16.xpose.msra.mxu0 0
        %788 = vmatprep.subr.bf16.mxu0 0
        %789 = vmatpush1.bf16.xpose.msra.mxu0 0
        %790 = vmatprep.subr.bf16.mxu0 0
        %791 = vmatpush1.bf16.xpose.msra.mxu0 0
        %792 = vmatprep.subr.bf16.mxu0 0
        %793 = vmatpush1.bf16.xpose.msra.mxu0 0
        %794 = vmatprep.subr.bf16.mxu0 0
        %795 = vmatpush1.bf16.xpose.msra.mxu0 0
        %796 = vmatprep.subr.bf16.mxu0 0
        %797 = vmatpush1.bf16.xpose.msra.mxu0 0
        %798 = vmatprep.subr.bf16.mxu0 0
        %799 = vmatpush1.bf16.xpose.msra.mxu0 0
        %800 = vmatprep.subr.bf16.mxu0 0
        %801 = vmatpush1.bf16.xpose.msra.mxu0 0
        %802 = vmatprep.subr.bf16.mxu0 0
        %803 = vmatpush1.bf16.xpose.msra.mxu0 0
        %804 = vmatprep.subr.bf16.mxu0 0
        %805 = vmatpush1.bf16.xpose.msra.mxu0 0
        %806 = vmatprep.subr.bf16.mxu0 0
        %807 = vmatpush1.bf16.xpose.msra.mxu0 0
        %808 = vmatprep.mubr.bf16.mxu0 0
        %809 = vmatmul.mubr.bf16.gmra.mrb[0].mxu0 %v771
        %v810 = vpop.f32.mrb[0].mxu0
        %v811 = vadd.f32 0.0, %v810
        %v812 = vpop.f32.mrb[0].mxu0
        %v813 = vpop.f32.mrb[0].mxu0
        %v814 = vpop.f32.mrb[0].mxu0
        %815 = vdwg.mxu0
        %v817 = vsel %vm769, %v758, 0
        %v820 = vsel %vm769, %v762, 0
        %822 = vmatprep.subr.bf16.mxu0 0
        %823 = vmatpush1.bf16.xpose.msra.mxu0 %v820
        %824 = vmatprep.subr.bf16.mxu0 0
        %825 = vmatpush1.bf16.xpose.msra.mxu0 0
        %826 = vmatprep.subr.bf16.mxu0 0
        %827 = vmatpush1.bf16.xpose.msra.mxu0 0
        %828 = vmatprep.subr.bf16.mxu0 0
        %829 = vmatpush1.bf16.xpose.msra.mxu0 0
        %830 = vmatprep.subr.bf16.mxu0 0
        %831 = vmatpush1.bf16.xpose.msra.mxu0 0
        %832 = vmatprep.subr.bf16.mxu0 0
        %833 = vmatpush1.bf16.xpose.msra.mxu0 0
        %834 = vmatprep.subr.bf16.mxu0 0
        %835 = vmatpush1.bf16.xpose.msra.mxu0 0
        %836 = vmatprep.subr.bf16.mxu0 0
        %837 = vmatpush1.bf16.xpose.msra.mxu0 0
        %838 = vmatprep.subr.bf16.mxu0 0
        %839 = vmatpush1.bf16.xpose.msra.mxu0 0
        %840 = vmatprep.subr.bf16.mxu0 0
        %841 = vmatpush1.bf16.xpose.msra.mxu0 0
        %842 = vmatprep.subr.bf16.mxu0 0
        %843 = vmatpush1.bf16.xpose.msra.mxu0 0
        %844 = vmatprep.subr.bf16.mxu0 0
        %845 = vmatpush1.bf16.xpose.msra.mxu0 0
        %846 = vmatprep.subr.bf16.mxu0 0
        %847 = vmatpush1.bf16.xpose.msra.mxu0 0
        %848 = vmatprep.subr.bf16.mxu0 0
        %849 = vmatpush1.bf16.xpose.msra.mxu0 0
        %850 = vmatprep.subr.bf16.mxu0 0
        %851 = vmatpush1.bf16.xpose.msra.mxu0 0
        %852 = vmatprep.subr.bf16.mxu0 0
        %853 = vmatpush1.bf16.xpose.msra.mxu0 0
        %854 = vmatprep.mubr.bf16.mxu0 0
        %855 = vmatmul.mubr.bf16.gmra.mrb[0].mxu0 %v817
        %v856 = vpop.f32.mrb[0].mxu0
        %v857 = vadd.f32 0.0, %v856
        %v858 = vpop.f32.mrb[0].mxu0
        %v859 = vpop.f32.mrb[0].mxu0
        %v860 = vpop.f32.mrb[0].mxu0
        %861 = vdwg.mxu0
        %v863 = vsel %vm769, %v759, 0
        %v866 = vsel %vm769, %v763, 0
        %868 = vmatprep.subr.bf16.mxu0 0
        %869 = vmatpush1.bf16.xpose.msra.mxu0 %v866
        %870 = vmatprep.subr.bf16.mxu0 0
        %871 = vmatpush1.bf16.xpose.msra.mxu0 0
        %872 = vmatprep.subr.bf16.mxu0 0
        %873 = vmatpush1.bf16.xpose.msra.mxu0 0
        %874 = vmatprep.subr.bf16.mxu0 0
        %875 = vmatpush1.bf16.xpose.msra.mxu0 0
        %876 = vmatprep.subr.bf16.mxu0 0
        %877 = vmatpush1.bf16.xpose.msra.mxu0 0
        %878 = vmatprep.subr.bf16.mxu0 0
        %879 = vmatpush1.bf16.xpose.msra.mxu0 0
        %880 = vmatprep.subr.bf16.mxu0 0
        %881 = vmatpush1.bf16.xpose.msra.mxu0 0
        %882 = vmatprep.subr.bf16.mxu0 0
        %883 = vmatpush1.bf16.xpose.msra.mxu0 0
        %884 = vmatprep.subr.bf16.mxu0 0
        %885 = vmatpush1.bf16.xpose.msra.mxu0 0
        %886 = vmatprep.subr.bf16.mxu0 0
        %887 = vmatpush1.bf16.xpose.msra.mxu0 0
        %888 = vmatprep.subr.bf16.mxu0 0
        %889 = vmatpush1.bf16.xpose.msra.mxu0 0
        %890 = vmatprep.subr.bf16.mxu0 0
        %891 = vmatpush1.bf16.xpose.msra.mxu0 0
        %892 = vmatprep.subr.bf16.mxu0 0
        %893 = vmatpush1.bf16.xpose.msra.mxu0 0
        %894 = vmatprep.subr.bf16.mxu0 0
        %895 = vmatpush1.bf16.xpose.msra.mxu0 0
        %896 = vmatprep.subr.bf16.mxu0 0
        %897 = vmatpush1.bf16.xpose.msra.mxu0 0
        %898 = vmatprep.subr.bf16.mxu0 0
        %899 = vmatpush1.bf16.xpose.msra.mxu0 0
        %900 = vmatprep.mubr.bf16.mxu0 0
        %901 = vmatmul.mubr.bf16.gmra.mrb[0].mxu0 %v863
        %v902 = vpop.f32.mrb[0].mxu0
        %v903 = vadd.f32 0.0, %v902
        %v904 = vpop.f32.mrb[0].mxu0
        %v905 = vpop.f32.mrb[0].mxu0
        %v906 = vpop.f32.mrb[0].mxu0
        %907 = vdwg.mxu0
        %v909 = vsel %vm769, %v760, 0
        %v912 = vsel %vm769, %v764, 0
        %914 = vmatprep.subr.bf16.mxu0 0
        %915 = vmatpush1.bf16.xpose.msra.mxu0 %v912
        %916 = vmatprep.subr.bf16.mxu0 0
        %917 = vmatpush1.bf16.xpose.msra.mxu0 0
        %918 = vmatprep.subr.bf16.mxu0 0
        %919 = vmatpush1.bf16.xpose.msra.mxu0 0
        %920 = vmatprep.subr.bf16.mxu0 0
        %921 = vmatpush1.bf16.xpose.msra.mxu0 0
        %922 = vmatprep.subr.bf16.mxu0 0
        %923 = vmatpush1.bf16.xpose.msra.mxu0 0
        %924 = vmatprep.subr.bf16.mxu0 0
        %925 = vmatpush1.bf16.xpose.msra.mxu0 0
        %926 = vmatprep.subr.bf16.mxu0 0
        %927 = vmatpush1.bf16.xpose.msra.mxu0 0
        %928 = vmatprep.subr.bf16.mxu0 0
        %929 = vmatpush1.bf16.xpose.msra.mxu0 0
        %930 = vmatprep.subr.bf16.mxu0 0
        %931 = vmatpush1.bf16.xpose.msra.mxu0 0
        %932 = vmatprep.subr.bf16.mxu0 0
        %933 = vmatpush1.bf16.xpose.msra.mxu0 0
        %934 = vmatprep.subr.bf16.mxu0 0
        %935 = vmatpush1.bf16.xpose.msra.mxu0 0
        %936 = vmatprep.subr.bf16.mxu0 0
        %937 = vmatpush1.bf16.xpose.msra.mxu0 0
        %938 = vmatprep.subr.bf16.mxu0 0
        %939 = vmatpush1.bf16.xpose.msra.mxu0 0
        %940 = vmatprep.subr.bf16.mxu0 0
        %941 = vmatpush1.bf16.xpose.msra.mxu0 0
        %942 = vmatprep.subr.bf16.mxu0 0
        %943 = vmatpush1.bf16.xpose.msra.mxu0 0
        %944 = vmatprep.subr.bf16.mxu0 0
        %945 = vmatpush1.bf16.xpose.msra.mxu0 0
        %946 = vmatprep.mubr.bf16.mxu0 0
        %947 = vmatmul.mubr.bf16.gmra.mrb[0].mxu0 %v909
        %v948 = vpop.f32.mrb[0].mxu0
        %v949 = vadd.f32 0.0, %v948
        %v950 = vpop.f32.mrb[0].mxu0
        %v951 = vpop.f32.mrb[0].mxu0
        %v952 = vpop.f32.mrb[0].mxu0
        %953 = vdwg.mxu0
        %v954 = vsel %vm769, %v811, -inf
        %955 = vmax.xlane.f32.xlu0 %v954
        %v956 = vpop.xlane.xlu0 %955
        %v957 = vsel %vm769, %v857, -inf
        %958 = vmax.xlane.f32.xlu0 %v957
        %v959 = vpop.xlane.xlu0 %958
        %v960 = vsel %vm769, %v903, -inf
        %961 = vmax.xlane.f32.xlu0 %v960
        %v962 = vpop.xlane.xlu0 %961
        %v963 = vsel %vm769, %v949, -inf
        %964 = vmax.xlane.f32.xlu0 %v963
        %v965 = vpop.xlane.xlu0 %964
        %v966 = vsub.f32 %v811, %v956
        %v967 = vsub.f32 %v857, %v959
        %v968 = vsub.f32 %v903, %v962
        %v969 = vsub.f32 %v949, %v965
        %v970 = vmul.f32 %v966, 1.442695
        %v971 = vpow.pop %v970
        %v972 = vmul.f32 %v967, 1.442695
        %v973 = vpow.pop %v972
        %v974 = vmul.f32 %v968, 1.442695
        %v975 = vpow.pop %v974
        %v976 = vmul.f32 %v969, 1.442695
        %v977 = vpow.pop %v976
        %v978 = vsel %vm769, %v971, 0.0
        %979 = vadd.xlane.f32.xlu0 %v978
        %v980 = vpop.xlane.xlu0 %979
        %v981 = vsel %vm769, %v973, 0.0
        %982 = vadd.xlane.f32.xlu0 %v981
        %v983 = vpop.xlane.xlu0 %982
        %v984 = vsel %vm769, %v975, 0.0
        %985 = vadd.xlane.f32.xlu0 %v984
        %v986 = vpop.xlane.xlu0 %985
        %v987 = vsel %vm769, %v977, 0.0
        %988 = vadd.xlane.f32.xlu0 %v987
        %v989 = vpop.xlane.xlu0 %988
        %v990 = vrcp.pop %v980
        %v991 = vrcp.pop %v983
        %v992 = vrcp.pop %v986
        %v993 = vrcp.pop %v989
        %v994 = vmul.f32 %v971, %v990
        %v995 = vmul.f32 %v973, %v991
        %v996 = vmul.f32 %v975, %v992
        %v997 = vmul.f32 %v977, %v993
        %v998 = vpack.c.bf16 %v994, %v994
        %v999 = vpack.c.bf16 %v995, %v995
        %v1000 = vpack.c.bf16 %v996, %v996
        %v1001 = vpack.c.bf16 %v997, %v997
        %v1003 = vsel %vm769, %v998, 0
        %vm1005 = vcmask 1043456
        %v1007 = vsel %vm1005, %v765, 0
        %1009 = vmatprep.subr.bf16.mxu0 0
        %1010 = vmatpush1.bf16.msra.mxu0 %v1007
        %1011 = vmatprep.subr.bf16.mxu0 0
        %1012 = vmatpush1.bf16.msra.mxu0 0
        %1013 = vmatprep.subr.bf16.mxu0 0
        %1014 = vmatpush1.bf16.msra.mxu0 0
        %1015 = vmatprep.subr.bf16.mxu0 0
        %1016 = vmatpush1.bf16.msra.mxu0 0
        %1017 = vmatprep.subr.bf16.mxu0 0
        %1018 = vmatpush1.bf16.msra.mxu0 0
        %1019 = vmatprep.subr.bf16.mxu0 0
        %1020 = vmatpush1.bf16.msra.mxu0 0
        %1021 = vmatprep.subr.bf16.mxu0 0
        %1022 = vmatpush1.bf16.msra.mxu0 0
        %1023 = vmatprep.subr.bf16.mxu0 0
        %1024 = vmatpush1.bf16.msra.mxu0 0
        %1025 = vmatprep.subr.bf16.mxu0 0
        %1026 = vmatpush1.bf16.msra.mxu0 0
        %1027 = vmatprep.subr.bf16.mxu0 0
        %1028 = vmatpush1.bf16.msra.mxu0 0
        %1029 = vmatprep.subr.bf16.mxu0 0
        %1030 = vmatpush1.bf16.msra.mxu0 0
        %1031 = vmatprep.subr.bf16.mxu0 0
        %1032 = vmatpush1.bf16.msra.mxu0 0
        %1033 = vmatprep.subr.bf16.mxu0 0
        %1034 = vmatpush1.bf16.msra.mxu0 0
        %1035 = vmatprep.subr.bf16.mxu0 0
        %1036 = vmatpush1.bf16.msra.mxu0 0
        %1037 = vmatprep.subr.bf16.mxu0 0
        %1038 = vmatpush1.bf16.msra.mxu0 0
        %1039 = vmatprep.subr.bf16.mxu0 0
        %1040 = vmatpush1.bf16.msra.mxu0 0
        %1041 = vmatprep.mubr.bf16.mxu0 0
        %1042 = vmatmul.mubr.bf16.gmra.mrb[0].mxu0 %v1003
        %v1043 = vpop.f32.mrb[0].mxu0
        %v1044 = vadd.f32 0.0, %v1043
        %v1045 = vpop.f32.mrb[0].mxu0
        %v1046 = vpop.f32.mrb[0].mxu0
        %v1047 = vpop.f32.mrb[0].mxu0
        %1048 = vdwg.mxu0
        %v1050 = vsel %vm769, %v999, 0
        %v1053 = vsel %vm1005, %v766, 0
        %1055 = vmatprep.subr.bf16.mxu0 0
        %1056 = vmatpush1.bf16.msra.mxu0 %v1053
        %1057 = vmatprep.subr.bf16.mxu0 0
        %1058 = vmatpush1.bf16.msra.mxu0 0
        %1059 = vmatprep.subr.bf16.mxu0 0
        %1060 = vmatpush1.bf16.msra.mxu0 0
        %1061 = vmatprep.subr.bf16.mxu0 0
        %1062 = vmatpush1.bf16.msra.mxu0 0
        %1063 = vmatprep.subr.bf16.mxu0 0
        %1064 = vmatpush1.bf16.msra.mxu0 0
        %1065 = vmatprep.subr.bf16.mxu0 0
        %1066 = vmatpush1.bf16.msra.mxu0 0
        %1067 = vmatprep.subr.bf16.mxu0 0
        %1068 = vmatpush1.bf16.msra.mxu0 0
        %1069 = vmatprep.subr.bf16.mxu0 0
        %1070 = vmatpush1.bf16.msra.mxu0 0
        %1071 = vmatprep.subr.bf16.mxu0 0
        %1072 = vmatpush1.bf16.msra.mxu0 0
        %1073 = vmatprep.subr.bf16.mxu0 0
        %1074 = vmatpush1.bf16.msra.mxu0 0
        %1075 = vmatprep.subr.bf16.mxu0 0
        %1076 = vmatpush1.bf16.msra.mxu0 0
        %1077 = vmatprep.subr.bf16.mxu0 0
        %1078 = vmatpush1.bf16.msra.mxu0 0
        %1079 = vmatprep.subr.bf16.mxu0 0
        %1080 = vmatpush1.bf16.msra.mxu0 0
        %1081 = vmatprep.subr.bf16.mxu0 0
        %1082 = vmatpush1.bf16.msra.mxu0 0
        %1083 = vmatprep.subr.bf16.mxu0 0
        %1084 = vmatpush1.bf16.msra.mxu0 0
        %1085 = vmatprep.subr.bf16.mxu0 0
        %1086 = vmatpush1.bf16.msra.mxu0 0
        %1087 = vmatprep.mubr.bf16.mxu0 0
        %1088 = vmatmul.mubr.bf16.gmra.mrb[0].mxu0 %v1050
        %v1089 = vpop.f32.mrb[0].mxu0
        %v1090 = vadd.f32 0.0, %v1089
        %v1091 = vpop.f32.mrb[0].mxu0
        %v1092 = vpop.f32.mrb[0].mxu0
        %v1093 = vpop.f32.mrb[0].mxu0
        %1094 = vdwg.mxu0
        %v1096 = vsel %vm769, %v1000, 0
        %v1099 = vsel %vm1005, %v767, 0
        %1101 = vmatprep.subr.bf16.mxu0 0
        %1102 = vmatpush1.bf16.msra.mxu0 %v1099
        %1103 = vmatprep.subr.bf16.mxu0 0
        %1104 = vmatpush1.bf16.msra.mxu0 0
        %1105 = vmatprep.subr.bf16.mxu0 0
        %1106 = vmatpush1.bf16.msra.mxu0 0
        %1107 = vmatprep.subr.bf16.mxu0 0
        %1108 = vmatpush1.bf16.msra.mxu0 0
        %1109 = vmatprep.subr.bf16.mxu0 0
        %1110 = vmatpush1.bf16.msra.mxu0 0
        %1111 = vmatprep.subr.bf16.mxu0 0
        %1112 = vmatpush1.bf16.msra.mxu0 0
        %1113 = vmatprep.subr.bf16.mxu0 0
        %1114 = vmatpush1.bf16.msra.mxu0 0
        %1115 = vmatprep.subr.bf16.mxu0 0
        %1116 = vmatpush1.bf16.msra.mxu0 0
        %1117 = vmatprep.subr.bf16.mxu0 0
        %1118 = vmatpush1.bf16.msra.mxu0 0
        %1119 = vmatprep.subr.bf16.mxu0 0
        %1120 = vmatpush1.bf16.msra.mxu0 0
        %1121 = vmatprep.subr.bf16.mxu0 0
        %1122 = vmatpush1.bf16.msra.mxu0 0
        %1123 = vmatprep.subr.bf16.mxu0 0
        %1124 = vmatpush1.bf16.msra.mxu0 0
        %1125 = vmatprep.subr.bf16.mxu0 0
        %1126 = vmatpush1.bf16.msra.mxu0 0
        %1127 = vmatprep.subr.bf16.mxu0 0
        %1128 = vmatpush1.bf16.msra.mxu0 0
        %1129 = vmatprep.subr.bf16.mxu0 0
        %1130 = vmatpush1.bf16.msra.mxu0 0
        %1131 = vmatprep.subr.bf16.mxu0 0
        %1132 = vmatpush1.bf16.msra.mxu0 0
        %1133 = vmatprep.mubr.bf16.mxu0 0
        %1134 = vmatmul.mubr.bf16.gmra.mrb[0].mxu0 %v1096
        %v1135 = vpop.f32.mrb[0].mxu0
        %v1136 = vadd.f32 0.0, %v1135
        %v1137 = vpop.f32.mrb[0].mxu0
        %v1138 = vpop.f32.mrb[0].mxu0
        %v1139 = vpop.f32.mrb[0].mxu0
        %1140 = vdwg.mxu0
        %v1142 = vsel %vm769, %v1001, 0
        %v1145 = vsel %vm1005, %v768, 0
        %1147 = vmatprep.subr.bf16.mxu0 0
        %1148 = vmatpush1.bf16.msra.mxu0 %v1145
        %1149 = vmatprep.subr.bf16.mxu0 0
        %1150 = vmatpush1.bf16.msra.mxu0 0
        %1151 = vmatprep.subr.bf16.mxu0 0
        %1152 = vmatpush1.bf16.msra.mxu0 0
        %1153 = vmatprep.subr.bf16.mxu0 0
        %1154 = vmatpush1.bf16.msra.mxu0 0
        %1155 = vmatprep.subr.bf16.mxu0 0
        %1156 = vmatpush1.bf16.msra.mxu0 0
        %1157 = vmatprep.subr.bf16.mxu0 0
        %1158 = vmatpush1.bf16.msra.mxu0 0
        %1159 = vmatprep.subr.bf16.mxu0 0
        %1160 = vmatpush1.bf16.msra.mxu0 0
        %1161 = vmatprep.subr.bf16.mxu0 0
        %1162 = vmatpush1.bf16.msra.mxu0 0
        %1163 = vmatprep.subr.bf16.mxu0 0
        %1164 = vmatpush1.bf16.msra.mxu0 0
        %1165 = vmatprep.subr.bf16.mxu0 0
        %1166 = vmatpush1.bf16.msra.mxu0 0
        %1167 = vmatprep.subr.bf16.mxu0 0
        %1168 = vmatpush1.bf16.msra.mxu0 0
        %1169 = vmatprep.subr.bf16.mxu0 0
        %1170 = vmatpush1.bf16.msra.mxu0 0
        %1171 = vmatprep.subr.bf16.mxu0 0
        %1172 = vmatpush1.bf16.msra.mxu0 0
        %1173 = vmatprep.subr.bf16.mxu0 0
        %1174 = vmatpush1.bf16.msra.mxu0 0
        %1175 = vmatprep.subr.bf16.mxu0 0
        %1176 = vmatpush1.bf16.msra.mxu0 0
        %1177 = vmatprep.subr.bf16.mxu0 0
        %1178 = vmatpush1.bf16.msra.mxu0 0
        %1179 = vmatprep.mubr.bf16.mxu0 0
        %1180 = vmatmul.mubr.bf16.gmra.mrb[0].mxu0 %v1142
        %v1181 = vpop.f32.mrb[0].mxu0
        %v1182 = vadd.f32 0.0, %v1181
        %v1183 = vpop.f32.mrb[0].mxu0
        %v1184 = vpop.f32.mrb[0].mxu0
        %v1185 = vpop.f32.mrb[0].mxu0
        %1186 = vdwg.mxu0
        %1188 = vrot.lane.b32.xlu0 %v1090, 8
        %v1189 = vpop.permute.xlu0 %1188
        %1192 = vrot.lane.b32.xlu0 %v1136, 16
        %v1193 = vpop.permute.xlu0 %1192
        %1196 = vrot.lane.b32.xlu0 %v1182, 24
        %v1197 = vpop.permute.xlu0 %1196
        %v1199 = vsel %vm769, %v1044, %v1189
        %vm1200 = vcmask 130048
        %v1201 = vsel %vm1200, %v1199, %v1193
        %vm1202 = vcmask 195584
        %v1203 = vsel %vm1202, %v1201, %v1197
        %v1204 = vpack.c.bf16 %v1203, %v1203
        %v1205 = vld [vmem:[#allocation10] sm:$0xf]
        %v1206 = vld [vmem:[#allocation10 + $0x4] sm:$0xf]
        %v1207 = vld [vmem:[#allocation10 + $0x8] sm:$0xf]
        %v1208 = vld [vmem:[#allocation10 + $0xc] sm:$0xf]
        %v1209 = vld [vmem:[#allocation11] sm:$0x1]
        %v1211 = vlaneseq
        %v1212 = vshrl.u32 %v1211, 7
        %v1213 = vsub.s32 0, %v1212
        %v1214 = vrot.slane %v1209, %v1213
        %v1220 = vunpack.c.l.b16 %v1205
        %v1221 = vunpack.c.l.b16 %v1206
        %v1222 = vunpack.c.l.b16 %v1207
        %v1223 = vunpack.c.l.b16 %v1208
        %v1224 = vpack.c.b16 %v1221, %v1220
        %v1225 = vpack.c.b16 %v1223, %v1222
        %vm1228 = vcmask 261120
        %v1230 = vsel %vm1228, %v1204, 0
        %1232 = vmatprep.subr.bf16.mxu0 0
        %1233 = vmatpush1.bf16.msra.mxu0 %v1224
        %1234 = vmatprep.subr.bf16.mxu0 0
        %1235 = vmatpush1.bf16.msra.mxu0 %v1225
        %1236 = vmatprep.subr.bf16.mxu0 0
        %1237 = vmatpush1.bf16.msra.mxu0 0
        %1238 = vmatprep.subr.bf16.mxu0 0
        %1239 = vmatpush1.bf16.msra.mxu0 0
        %1240 = vmatprep.subr.bf16.mxu0 0
        %1241 = vmatpush1.bf16.msra.mxu0 0
        %1242 = vmatprep.subr.bf16.mxu0 0
        %1243 = vmatpush1.bf16.msra.mxu0 0
        %1244 = vmatprep.subr.bf16.mxu0 0
        %1245 = vmatpush1.bf16.msra.mxu0 0
        %1246 = vmatprep.subr.bf16.mxu0 0
        %1247 = vmatpush1.bf16.msra.mxu0 0
        %1248 = vmatprep.subr.bf16.mxu0 0
        %1249 = vmatpush1.bf16.msra.mxu0 0
        %1250 = vmatprep.subr.bf16.mxu0 0
        %1251 = vmatpush1.bf16.msra.mxu0 0
        %1252 = vmatprep.subr.bf16.mxu0 0
        %1253 = vmatpush1.bf16.msra.mxu0 0
        %1254 = vmatprep.subr.bf16.mxu0 0
        %1255 = vmatpush1.bf16.msra.mxu0 0
        %1256 = vmatprep.subr.bf16.mxu0 0
        %1257 = vmatpush1.bf16.msra.mxu0 0
        %1258 = vmatprep.subr.bf16.mxu0 0
        %1259 = vmatpush1.bf16.msra.mxu0 0
        %1260 = vmatprep.subr.bf16.mxu0 0
        %1261 = vmatpush1.bf16.msra.mxu0 0
        %1262 = vmatprep.subr.bf16.mxu0 0
        %1263 = vmatpush1.bf16.msra.mxu0 0
        %1264 = vmatprep.mubr.bf16.mxu0 0
        %1265 = vmatmul.mubr.bf16.gmra.mrb[0].mxu0 %v1230
        %v1266 = vpop.f32.mrb[0].mxu0
        %v1267 = vadd.f32 %v1214, %v1266
        %v1268 = vpop.f32.mrb[0].mxu0
        %v1269 = vpop.f32.mrb[0].mxu0
        %v1270 = vpop.f32.mrb[0].mxu0
        %1271 = vdwg.mxu0
        %v1272 = vadd.f32 %v752, %v1267
        %v1273 = vld [vmem:[#allocation16] sm:$0x1]
        %v1274 = vld [vmem:[#allocation17] sm:$0x1]
        %v1275 = vsel %vm1228, %v1272, 0.0
        %1276 = vadd.xlane.f32.xlu0 %v1275
        %v1277 = vpop.xlane.xlu0 %1276
        %v1278 = vrcp.pop 32.0
        %v1279 = vmul.f32 %v1277, %v1278
        %v1280 = vsub.f32 %v1272, %v1279
        %v1281 = vmul.f32 %v1280, %v1280
        %v1282 = vsel %vm1228, %v1281, 0.0
        %1283 = vadd.xlane.f32.xlu0 %v1282
        %v1284 = vpop.xlane.xlu0 %1283
        %v1285 = vmul.f32 %v1284, %v1278
        %v1286 = vadd.f32 %v1285, 1e-05
        %v1287 = vrsqrt.pop %v1286
        %v1288 = vmul.f32 %v1280, %v1287
        %v1290 = vlaneseq
        %v1291 = vshrl.u32 %v1290, 7
        %v1292 = vsub.s32 0, %v1291
        %v1293 = vrot.slane %v1273, %v1292
        %v1295 = vmul.f32 %v1288, %v1293
        %v1297 = vlaneseq
        %v1298 = vshrl.u32 %v1297, 7
        %v1299 = vsub.s32 0, %v1298
        %v1300 = vrot.slane %v1274, %v1299
        %v1302 = vadd.f32 %v1295, %v1300
        %v1303 = vpack.c.bf16 %v1302, %v1302
        %v1304 = vld [vmem:[#allocation19] sm:$0xf]
        %v1305 = vld [vmem:[#allocation19 + $0x4] sm:$0xf]
        %v1306 = vld [vmem:[#allocation19 + $0x8] sm:$0xf]
        %v1307 = vld [vmem:[#allocation19 + $0xc] sm:$0xf]
        %v1308 = vld [vmem:[#allocation20] sm:$0x1]
        %v1310 = vlaneseq
        %v1311 = vshrl.u32 %v1310, 7
        %v1312 = vsub.s32 0, %v1311
        %v1313 = vrot.slane %v1308, %v1312
        %v1319 = vunpack.c.l.b16 %v1304
        %v1320 = vunpack.c.l.b16 %v1305
        %v1321 = vunpack.c.l.b16 %v1306
        %v1322 = vunpack.c.l.b16 %v1307
        %v1323 = vpack.c.b16 %v1320, %v1319
        %v1324 = vpack.c.b16 %v1322, %v1321
        %v1328 = vsel %vm1228, %v1303, 0
        %1330 = vmatprep.subr.bf16.mxu0 0
        %1331 = vmatpush1.bf16.msra.mxu0 %v1323
        %1332 = vmatprep.subr.bf16.mxu0 0
        %1333 = vmatpush1.bf16.msra.mxu0 %v1324
        %1334 = vmatprep.subr.bf16.mxu0 0
        %1335 = vmatpush1.bf16.msra.mxu0 0
        %1336 = vmatprep.subr.bf16.mxu0 0
        %1337 = vmatpush1.bf16.msra.mxu0 0
        %1338 = vmatprep.subr.bf16.mxu0 0
        %1339 = vmatpush1.bf16.msra.mxu0 0
        %1340 = vmatprep.subr.bf16.mxu0 0
        %1341 = vmatpush1.bf16.msra.mxu0 0
        %1342 = vmatprep.subr.bf16.mxu0 0
        %1343 = vmatpush1.bf16.msra.mxu0 0
        %1344 = vmatprep.subr.bf16.mxu0 0
        %1345 = vmatpush1.bf16.msra.mxu0 0
        %1346 = vmatprep.subr.bf16.mxu0 0
        %1347 = vmatpush1.bf16.msra.mxu0 0
        %1348 = vmatprep.subr.bf16.mxu0 0
        %1349 = vmatpush1.bf16.msra.mxu0 0
        %1350 = vmatprep.subr.bf16.mxu0 0
        %1351 = vmatpush1.bf16.msra.mxu0 0
        %1352 = vmatprep.subr.bf16.mxu0 0
        %1353 = vmatpush1.bf16.msra.mxu0 0
        %1354 = vmatprep.subr.bf16.mxu0 0
        %1355 = vmatpush1.bf16.msra.mxu0 0
        %1356 = vmatprep.subr.bf16.mxu0 0
        %1357 = vmatpush1.bf16.msra.mxu0 0
        %1358 = vmatprep.subr.bf16.mxu0 0
        %1359 = vmatpush1.bf16.msra.mxu0 0
        %1360 = vmatprep.subr.bf16.mxu0 0
        %1361 = vmatpush1.bf16.msra.mxu0 0
        %1362 = vmatprep.mubr.bf16.mxu0 0
        %1363 = vmatmul.mubr.bf16.gmra.mrb[0].mxu0 %v1328
        %v1364 = vpop.f32.mrb[0].mxu0
        %v1365 = vadd.f32 %v1313, %v1364
        %v1366 = vpop.f32.mrb[0].mxu0
        %v1367 = vpop.f32.mrb[0].mxu0
        %v1368 = vpop.f32.mrb[0].mxu0
        %1369 = vdwg.mxu0
        %v1370 = vmul.f32 %v1365, %v1365
        %v1371 = vmul.f32 %v1365, %v1370
        %v1372 = vmul.f32 %v1371, 0.044715
        %v1373 = vadd.f32 %v1365, %v1372
        %v1374 = vmul.f32 %v1373, 0.7978846
        %v1375 = vtanh.pop %v1374
        %v1376 = vadd.f32 %v1375, 1.0
        %v1377 = vmul.f32 %v1376, 0.5
        %v1378 = vmul.f32 %v1365, %v1377
        %v1379 = vpack.c.bf16 %v1378, %v1378
        %v1380 = vld [vmem:[#allocation22] sm:$0xf]
        %v1381 = vld [vmem:[#allocation22 + $0x4] sm:$0xf]
        %v1382 = vld [vmem:[#allocation22 + $0x8] sm:$0xf]
        %v1383 = vld [vmem:[#allocation22 + $0xc] sm:$0xf]
        %v1384 = vld [vmem:[#allocation22 + $0x10] sm:$0xf]
        %v1385 = vld [vmem:[#allocation22 + $0x14] sm:$0xf]
        %v1386 = vld [vmem:[#allocation22 + $0x18] sm:$0xf]
        %v1387 = vld [vmem:[#allocation22 + $0x1c] sm:$0xf]
        %v1388 = vld [vmem:[#allocation22 + $0x20] sm:$0xf]
        %v1389 = vld [vmem:[#allocation22 + $0x24] sm:$0xf]
        %v1390 = vld [vmem:[#allocation22 + $0x28] sm:$0xf]
        %v1391 = vld [vmem:[#allocation22 + $0x2c] sm:$0xf]
        %v1392 = vld [vmem:[#allocation22 + $0x30] sm:$0xf]
        %v1393 = vld [vmem:[#allocation22 + $0x34] sm:$0xf]
        %v1394 = vld [vmem:[#allocation22 + $0x38] sm:$0xf]
        %v1395 = vld [vmem:[#allocation22 + $0x3c] sm:$0xf]
        %v1396 = vld [vmem:[#allocation23] sm:$0x1]
        %v1398 = vlaneseq
        %v1399 = vshrl.u32 %v1398, 7
        %v1400 = vsub.s32 0, %v1399
        %v1401 = vrot.slane %v1396, %v1400
        %v1419 = vunpack.c.l.b16 %v1380
        %v1420 = vunpack.c.l.b16 %v1381
        %v1421 = vunpack.c.l.b16 %v1382
        %v1422 = vunpack.c.l.b16 %v1383
        %v1423 = vunpack.c.l.b16 %v1384
        %v1424 = vunpack.c.l.b16 %v1385
        %v1425 = vunpack.c.l.b16 %v1386
        %v1426 = vunpack.c.l.b16 %v1387
        %v1427 = vunpack.c.l.b16 %v1388
        %v1428 = vunpack.c.l.b16 %v1389
        %v1429 = vunpack.c.l.b16 %v1390
        %v1430 = vunpack.c.l.b16 %v1391
        %v1431 = vunpack.c.l.b16 %v1392
        %v1432 = vunpack.c.l.b16 %v1393
        %v1433 = vunpack.c.l.b16 %v1394
        %v1434 = vunpack.c.l.b16 %v1395
        %v1435 = vpack.c.b16 %v1420, %v1419
        %v1436 = vpack.c.b16 %v1422, %v1421
        %v1437 = vpack.c.b16 %v1424, %v1423
        %v1438 = vpack.c.b16 %v1426, %v1425
        %v1439 = vpack.c.b16 %v1428, %v1427
        %v1440 = vpack.c.b16 %v1430, %v1429
        %v1441 = vpack.c.b16 %v1432, %v1431
        %v1442 = vpack.c.b16 %v1434, %v1433
        %1451 = vmatprep.subr.bf16.mxu0 0
        %1452 = vmatpush1.bf16.msra.mxu0 %v1435
        %1453 = vmatprep.subr.bf16.mxu0 0
        %1454 = vmatpush1.bf16.msra.mxu0 %v1436
        %1455 = vmatprep.subr.bf16.mxu0 0
        %1456 = vmatpush1.bf16.msra.mxu0 %v1437
        %1457 = vmatprep.subr.bf16.mxu0 0
        %1458 = vmatpush1.bf16.msra.mxu0 %v1438
        %1459 = vmatprep.subr.bf16.mxu0 0
        %1460 = vmatpush1.bf16.msra.mxu0 %v1439
        %1461 = vmatprep.subr.bf16.mxu0 0
        %1462 = vmatpush1.bf16.msra.mxu0 %v1440
        %1463 = vmatprep.subr.bf16.mxu0 0
        %1464 = vmatpush1.bf16.msra.mxu0 %v1441
        %1465 = vmatprep.subr.bf16.mxu0 0
        %1466 = vmatpush1.bf16.msra.mxu0 %v1442
        %1467 = vmatprep.subr.bf16.mxu0 0
        %1468 = vmatpush1.bf16.msra.mxu0 0
        %1469 = vmatprep.subr.bf16.mxu0 0
        %1470 = vmatpush1.bf16.msra.mxu0 0
        %1471 = vmatprep.subr.bf16.mxu0 0
        %1472 = vmatpush1.bf16.msra.mxu0 0
        %1473 = vmatprep.subr.bf16.mxu0 0
        %1474 = vmatpush1.bf16.msra.mxu0 0
        %1475 = vmatprep.subr.bf16.mxu0 0
        %1476 = vmatpush1.bf16.msra.mxu0 0
        %1477 = vmatprep.subr.bf16.mxu0 0
        %1478 = vmatpush1.bf16.msra.mxu0 0
        %1479 = vmatprep.subr.bf16.mxu0 0
        %1480 = vmatpush1.bf16.msra.mxu0 0
        %1481 = vmatprep.subr.bf16.mxu0 0
        %1482 = vmatpush1.bf16.msra.mxu0 0
        %1483 = vmatprep.mubr.bf16.mxu0 0
        %1484 = vmatmul.mubr.bf16.gmra.mrb[0].mxu0 %v1379
        %v1485 = vpop.f32.mrb[0].mxu0
        %v1486 = vadd.f32 %v1401, %v1485
        %v1487 = vpop.f32.mrb[0].mxu0
        %v1488 = vpop.f32.mrb[0].mxu0
        %v1489 = vpop.f32.mrb[0].mxu0
        %1490 = vdwg.mxu0
        %v1491 = vadd.f32 %v1272, %v1486
        %1492 = vst.msk [vmem:[%s588] sm:$0xff] %vm1228, %v1491
        %s1493 = sand.u32 %s314, 1
        %s1494 = scalar_lea.sflag [#allocation7], %s1493
        %s1495 = sand.u32 %s314, 1
        %s1496 = smul.addr %s1495, 8
        %s1497 = scalar_lea.vmem [#allocation25], %s1496
        // Predicated region
        $region121: #{tpu_custom_call.1} parent=67 // pred_check
          %p1498 = pneg %p324
        $region122: #{tpu_custom_call.1} parent=67 // pred_check_branch
          %1500 = sbr.rel (%p1498) target = $region124
        $region123: #{tpu_custom_call.1} parent=67 // pred_region
          %s1502 = ssub.s32 128, 128
          %1503 = vsyncadd %s1494, %s1502
          %s1504 = sadd.s32 %s40, %s39
          %s1505 = smul.addr %s1504, 128
          %s1506 = scalar_lea.hbm %s12, %s1505
          %s1508 = sshll.u32 %s1497, 4
          %s1509 = int_to_ptr.vmem [resolvable:$true] %s1508
          %1511 = dma.vmem_to_hbm [thread:$0]  %s1509, 128, %s1506, %s1494
        $region124: #{tpu_custom_call.1} parent=67 // pred_fallthru
          _
      $region68: #{tpu_custom_call.1} parent=5 // pred_fallthru
        _
      %p1512 = scmp.le.s32.totalorder 2, %s30
      // Predicated region
      $region125: #{tpu_custom_call.1} parent=5 // pred_check
        %p1513 = pneg %p1512
      $region126: #{tpu_custom_call.1} parent=5 // pred_check_branch
        %1515 = sbr.rel (%p1513) target = $region128
      $region127: #{tpu_custom_call.1} parent=5 // pred_region
        %s1516 = ssub.s32 %s30, 2
        // Predicated region
        $region129: #{tpu_custom_call.1} parent=127 // pred_check
          %p1517 = pneg %p330
        $region130: #{tpu_custom_call.1} parent=127 // pred_check_branch
          %1519 = sbr.rel (%p1517) target = $region132
        $region131: #{tpu_custom_call.1} parent=127 // pred_region
          %s1520 = sand.u32 %s315, 1
          %s1521 = scalar_lea.sflag [#allocation7], %s1520
          %s1522 = sand.u32 %s315, 1
          %s1523 = smul.addr %s1522, 8
          %s1524 = scalar_lea.vmem [#allocation25], %s1523
          %1525 = dma.done %s1521, 128
        $region132: #{tpu_custom_call.1} parent=127 // pred_fallthru
          _
      $region128: #{tpu_custom_call.1} parent=5 // pred_fallthru
        _
    $region6: #{tpu_custom_call.1} parent=1 // loop_footer
      %s34 = sadd.s32 1, %s30
    $region7: #{tpu_custom_call.1} parent=1 // loop_footer_branch
      %29 = sbr.rel target = $region3
    $region8: #{tpu_custom_call.1} parent=1 // loop_exit
      _
    %1526 = vsyncpa [#allocation6], 1
    %s1527 = scalar_lea.sflag [#allocation6], 1
    %1528 = vsyncpa %s1527, 1
    %1529 = vsyncpa [#allocation9], 1
    %1530 = vsyncpa [#allocation12], 1
    %1531 = vsyncpa [#allocation15], 1
    %1532 = vsyncpa [#allocation18], 1
    %1533 = vsyncpa [#allocation21], 1
    %1534 = vsyncpa [#allocation24], 1
    %1535 = vsyncpa [#allocation7], 1
    %s1536 = scalar_lea.sflag [#allocation7], 1
    %1537 = vsyncpa %s1536, 1

</llo_original>
